<compile_context>
chip_gen: v7x
topology: tpu7x:2x2x1
jax: 0.10.0
libtpu: 0.0.40
codegen_flags: <defaults>
</compile_context>

<pallas_src>
import jax
import jax.numpy as jnp
import numpy as np
from jax.experimental import pallas as pl
from jax.experimental.pallas import tpu as pltpu


def edm_precond_kernel(coef_ref, x_ref, w1_ref, b1_ref, w2_ref, b2_ref, out_ref):
    """One grid step = one (TM, D) row tile of batch element pl.program_id(0)."""
    b = pl.program_id(0)
    c_in = coef_ref[4 * b + 0]        # scalar SMEM reads
    c_skip = coef_ref[4 * b + 1]
    c_out = coef_ref[4 * b + 2]
    c_noise = coef_ref[4 * b + 3]

    x = x_ref[...]                                    # (TM, D) f32
    x_in = (c_in * x).astype(jnp.bfloat16)            # bf16 MXU operand, f32 accumulation

    h = jnp.dot(x_in, w1_ref[...], preferred_element_type=jnp.float32)
    bias1 = b1_ref[...] + c_noise                     # fold c_noise into (1, H) bias
    h = jnp.tanh(h + bias1)                           # EUP tanh, f32
    f_x = jnp.dot(h.astype(jnp.bfloat16), w2_ref[...],
                  preferred_element_type=jnp.float32) + b2_ref[...]

    out_ref[...] = (c_skip * x + c_out * f_x).astype(out_ref.dtype)


def edm_precond_forward(x, sigma, w1, b1, w2, b2, *, sigma_data: float = 1.0,
                        block_rows: int = 512):
    """denoised = c_skip * x + c_out * model(c_in * x, c_noise)  (do_cache=False path)."""
    B, N, D = x.shape
    H = w1.shape[1]
    assert w1.shape == (D, H) and w2.shape == (H, D)
    assert b1.shape == (1, H) and b2.shape == (1, D)
    assert sigma.shape == (B,)

    # --- per-batch preconditioning coefficients (tiny wrapper compute) ---
    sd2 = jnp.float32(sigma_data) ** 2
    sig = sigma.astype(jnp.float32)
    denom = sig * sig + sd2
    c_skip = sd2 / denom
    c_out = sig * sigma_data / jnp.sqrt(denom)
    c_in = 1.0 / jnp.sqrt(denom)
    c_noise = jnp.log(sig) / 4.0
    coef = jnp.stack([c_in, c_skip, c_out, c_noise], axis=-1).reshape(-1)  # (4*B,) f32

    # --- choose row tile: big (amortize per-step overhead), multiple of 8 ---
    def round_up(v, m):
        return ((v + m - 1) // m) * m

    TM = round_up(min(block_rows, round_up(N, 8)), 8)
    num_tiles = (N + TM - 1) // TM
    N_pad = num_tiles * TM
    if N_pad != N:
        x = jnp.pad(x, ((0, 0), (0, N_pad - N), (0, 0)))  # padded rows sliced off below

    # bf16 weights (halves weight DMA + VMEM); biases stay f32 for the f32 accumulators.
    w1b = w1.astype(jnp.bfloat16)
    w2b = w2.astype(jnp.bfloat16)
    b1f = b1.astype(jnp.float32)
    b2f = b2.astype(jnp.float32)

    out = pl.pallas_call(
        edm_precond_kernel,
        out_shape=jax.ShapeDtypeStruct((B, N_pad, D), x.dtype),
        grid_spec=pltpu.PrefetchScalarGridSpec(
            num_scalar_prefetch=0,
            grid=(B, num_tiles),
            in_specs=[
                pl.BlockSpec(memory_space=pltpu.MemorySpace.SMEM),   # coef (4*B,) scalars
                pl.BlockSpec((None, TM, D), lambda b, i: (b, i, 0)), # x row tile of batch b
                pl.BlockSpec(memory_space=pltpu.MemorySpace.VMEM),   # w1 (resident, bf16)
                pl.BlockSpec(memory_space=pltpu.MemorySpace.VMEM),   # b1
                pl.BlockSpec(memory_space=pltpu.MemorySpace.VMEM),   # w2 (resident, bf16)
                pl.BlockSpec(memory_space=pltpu.MemorySpace.VMEM),   # b2
            ],
            out_specs=pl.BlockSpec((None, TM, D), lambda b, i: (b, i, 0)),  # lane-dense
        ),
        compiler_params=pltpu.CompilerParams(
            dimension_semantics=("parallel", "parallel"),
            vmem_limit_bytes=32 * 1024 * 1024,
        ),
    )(coef, x, w1b, b1f, w2b, b2f)

    return out[:, :N, :]


def edm_precond_reference(x, sigma, w1, b1, w2, b2, *, sigma_data: float = 1.0):
    """Pure-JAX (f32) reference mirroring the PyTorch forward (do_cache=False path)."""
    sig = sigma.reshape(-1, 1, 1)
    c_skip = sigma_data ** 2 / (sig ** 2 + sigma_data ** 2)
    c_out = sig * sigma_data / jnp.sqrt(sig ** 2 + sigma_data ** 2)
    c_in = 1.0 / jnp.sqrt(sigma_data ** 2 + sig ** 2)
    c_noise = jnp.log(sig) / 4.0
    h = jnp.tanh(jnp.einsum("bnd,dh->bnh", c_in * x, w1) + b1 + c_noise)
    f_x = jnp.einsum("bnh,hd->bnd", h, w2) + b2
    return c_skip * x + c_out * f_x


# TODO(synk): the do_cache=True / cache-passing branch of the backbone has no
# concrete definition in the reference module (model is abstract); only the
# do_cache=False path is implemented.

if __name__ == "__main__":
    sigma_data = 1.0
    key = jax.random.PRNGKey(0)
    kx, ks, kw1, kb1, kw2, kb2 = jax.random.split(key, 6)

    B, N, D, H = 2, 512, 128, 128
    x = jax.random.normal(kx, (B, N, D), dtype=jnp.float32)
    sigma = jnp.exp(jax.random.normal(ks, (B,), dtype=jnp.float32))  # positive noise levels

    # Deterministic synthetic backbone parameters (f32 masters; kernel uses bf16 copies).
    w1 = jax.random.normal(kw1, (D, H), dtype=jnp.float32) * (1.0 / np.sqrt(D))
    b1 = jax.random.normal(kb1, (1, H), dtype=jnp.float32) * 0.01
    w2 = jax.random.normal(kw2, (H, D), dtype=jnp.float32) * (1.0 / np.sqrt(H))
    b2 = jax.random.normal(kb2, (1, D), dtype=jnp.float32) * 0.01

    out = jax.block_until_ready(
        edm_precond_forward(x, sigma, w1, b1, w2, b2, sigma_data=sigma_data))
    ref = edm_precond_reference(x, sigma, w1, b1, w2, b2, sigma_data=sigma_data)
    # bf16 matmul operands (f32 accumulation) => looser tolerance than pure f32.
    np.testing.assert_allclose(np.asarray(out), np.asarray(ref), rtol=3e-2, atol=3e-2)

    # Ragged case: N not a multiple of the row tile / not a power of two
    # (exercises the TM-clamp + padding path).
    B2, N2 = 2, 40
    x_s = jax.random.normal(kx, (B2, N2, D), dtype=jnp.float32)
    sigma_s = jnp.exp(jax.random.normal(ks, (B2,), dtype=jnp.float32))
    out_s = jax.block_until_ready(
        edm_precond_forward(x_s, sigma_s, w1, b1, w2, b2, sigma_data=sigma_data))
    ref_s = edm_precond_reference(x_s, sigma_s, w1, b1, w2, b2, sigma_data=sigma_data)
    np.testing.assert_allclose(np.asarray(out_s), np.asarray(ref_s), rtol=3e-2, atol=3e-2)

    print("KERNEL_OK")
</pallas_src>

<mosaic_0001>
module attributes {stable_mosaic.version = 11 : i64} {
  func.func @edm_precond_kernel(%arg0: i32, %arg1: i32, %arg2: memref<8xf32, #tpu.memory_space<smem>>, %arg3: memref<1x512x128xf32, #tpu.memory_space<vmem>>, %arg4: memref<128x128xbf16, #tpu.memory_space<vmem>>, %arg5: memref<1x128xf32, #tpu.memory_space<vmem>>, %arg6: memref<128x128xbf16, #tpu.memory_space<vmem>>, %arg7: memref<1x128xf32, #tpu.memory_space<vmem>>, %arg8: memref<1x512x128xf32, #tpu.memory_space<vmem>>) attributes {dimension_semantics = [#tpu.dimension_semantics<parallel>, #tpu.dimension_semantics<parallel>], iteration_bounds = array<i64: 2, 1>, scalar_prefetch = 0 : i64, scratch_operands = 0 : i64, tpu.core_type = #tpu.core_type<tc>, window_params = [{transform_indices = @transform_0, window_bounds = array<i64: 8>}, {transform_indices = @transform_1, window_bounds = array<i64: 1, 512, 128>}, {pipeline_mode = #tpu.pipeline_mode<synchronous>, transform_indices = @transform_2, window_bounds = array<i64: 128, 128>}, {pipeline_mode = #tpu.pipeline_mode<synchronous>, transform_indices = @transform_3, window_bounds = array<i64: 1, 128>}, {pipeline_mode = #tpu.pipeline_mode<synchronous>, transform_indices = @transform_4, window_bounds = array<i64: 128, 128>}, {pipeline_mode = #tpu.pipeline_mode<synchronous>, transform_indices = @transform_5, window_bounds = array<i64: 1, 128>}, {transform_indices = @transform_6, window_bounds = array<i64: 1, 512, 128>}]} {
    %c4_i32 = arith.constant 4 : i32
    %0 = arith.muli %c4_i32, %arg0 : i32
    %c0_i32 = arith.constant 0 : i32
    %1 = arith.addi %0, %c0_i32 : i32
    %2 = arith.index_cast %1 : i32 to index
    %3 = memref.load %arg2[%2] : memref<8xf32, #tpu.memory_space<smem>>
    %c4_i32_0 = arith.constant 4 : i32
    %4 = arith.muli %c4_i32_0, %arg0 : i32
    %c1_i32 = arith.constant 1 : i32
    %5 = arith.addi %4, %c1_i32 : i32
    %6 = arith.index_cast %5 : i32 to index
    %7 = memref.load %arg2[%6] : memref<8xf32, #tpu.memory_space<smem>>
    %c4_i32_1 = arith.constant 4 : i32
    %8 = arith.muli %c4_i32_1, %arg0 : i32
    %c2_i32 = arith.constant 2 : i32
    %9 = arith.addi %8, %c2_i32 : i32
    %10 = arith.index_cast %9 : i32 to index
    %11 = memref.load %arg2[%10] : memref<8xf32, #tpu.memory_space<smem>>
    %c4_i32_2 = arith.constant 4 : i32
    %12 = arith.muli %c4_i32_2, %arg0 : i32
    %c3_i32 = arith.constant 3 : i32
    %13 = arith.addi %12, %c3_i32 : i32
    %14 = arith.index_cast %13 : i32 to index
    %15 = memref.load %arg2[%14] : memref<8xf32, #tpu.memory_space<smem>>
    %c0 = arith.constant 0 : index
    %c0_3 = arith.constant 0 : index
    %c0_4 = arith.constant 0 : index
    %16 = vector.load %arg3[%c0, %c0_3, %c0_4] : memref<1x512x128xf32, #tpu.memory_space<vmem>>, vector<1x512x128xf32>
    %17 = vector.shape_cast %16 : vector<1x512x128xf32> to vector<512x128xf32>
    %18 = vector.broadcast %3 : f32 to vector<512x128xf32>
    %19 = arith.mulf %18, %17 : vector<512x128xf32>
    %20 = arith.truncf %19 : vector<512x128xf32> to vector<512x128xbf16>
    %c0_5 = arith.constant 0 : index
    %c0_6 = arith.constant 0 : index
    %21 = vector.load %arg4[%c0_5, %c0_6] : memref<128x128xbf16, #tpu.memory_space<vmem>>, vector<128x128xbf16>
    %cst = arith.constant dense<0.000000e+00> : vector<512x128xf32>
    %22 = tpu.matmul %20, %21, %cst {dimension_numbers = #tpu.dot_dimension_numbers<[1], [0], [0], [1], [0, 0, 1, 1], [], []>} : vector<512x128xbf16>, vector<128x128xbf16>, vector<512x128xf32> -> vector<512x128xf32>
    %c0_7 = arith.constant 0 : index
    %c0_8 = arith.constant 0 : index
    %23 = vector.load %arg5[%c0_7, %c0_8] : memref<1x128xf32, #tpu.memory_space<vmem>>, vector<1x128xf32>
    %24 = vector.broadcast %15 : f32 to vector<1x128xf32>
    %25 = arith.addf %23, %24 : vector<1x128xf32>
    %26 = vector.broadcast %25 : vector<1x128xf32> to vector<512x128xf32>
    %27 = arith.addf %22, %26 : vector<512x128xf32>
    %28 = math.tanh %27 : vector<512x128xf32>
    %29 = arith.truncf %28 : vector<512x128xf32> to vector<512x128xbf16>
    %c0_9 = arith.constant 0 : index
    %c0_10 = arith.constant 0 : index
    %30 = vector.load %arg6[%c0_9, %c0_10] : memref<128x128xbf16, #tpu.memory_space<vmem>>, vector<128x128xbf16>
    %cst_11 = arith.constant dense<0.000000e+00> : vector<512x128xf32>
    %31 = tpu.matmul %29, %30, %cst_11 {dimension_numbers = #tpu.dot_dimension_numbers<[1], [0], [0], [1], [0, 0, 1, 1], [], []>} : vector<512x128xbf16>, vector<128x128xbf16>, vector<512x128xf32> -> vector<512x128xf32>
    %c0_12 = arith.constant 0 : index
    %c0_13 = arith.constant 0 : index
    %32 = vector.load %arg7[%c0_12, %c0_13] : memref<1x128xf32, #tpu.memory_space<vmem>>, vector<1x128xf32>
    %33 = vector.broadcast %32 : vector<1x128xf32> to vector<512x128xf32>
    %34 = arith.addf %31, %33 : vector<512x128xf32>
    %35 = vector.broadcast %7 : f32 to vector<512x128xf32>
    %36 = arith.mulf %35, %17 : vector<512x128xf32>
    %37 = vector.broadcast %11 : f32 to vector<512x128xf32>
    %38 = arith.mulf %37, %34 : vector<512x128xf32>
    %39 = arith.addf %36, %38 : vector<512x128xf32>
    %c0_14 = arith.constant 0 : index
    %c0_15 = arith.constant 0 : index
    %c0_16 = arith.constant 0 : index
    %40 = vector.load %arg8[%c0_14, %c0_15, %c0_16] : memref<1x512x128xf32, #tpu.memory_space<vmem>>, vector<1x512x128xf32>
    %41 = vector.shape_cast %40 : vector<1x512x128xf32> to vector<512x128xf32>
    %42 = vector.shape_cast %39 : vector<512x128xf32> to vector<1x512x128xf32>
    tpu.vector_store %arg8[%c0_14, %c0_15, %c0_16], %42 {strides = array<i32>} : memref<1x512x128xf32, #tpu.memory_space<vmem>>, vector<1x512x128xf32>,
    return
  }
  func.func @transform_0(%arg0: i32, %arg1: i32) -> i32 {
    %c0_i32 = arith.constant 0 : i32
    %c0_i32_0 = arith.constant 0 : i32
    return %c0_i32 : i32
  }
  func.func @transform_1(%arg0: i32, %arg1: i32) -> (i32, i32, i32) {
    %c0_i32 = arith.constant 0 : i32
    %c0_i32_0 = arith.constant 0 : i32
    return %arg0, %arg1, %c0_i32 : i32, i32, i32
  }
  func.func @transform_2(%arg0: i32, %arg1: i32) -> (i32, i32) {
    %c0_i32 = arith.constant 0 : i32
    %c0_i32_0 = arith.constant 0 : i32
    %c0_i32_1 = arith.constant 0 : i32
    return %c0_i32, %c0_i32_0 : i32, i32
  }
  func.func @transform_3(%arg0: i32, %arg1: i32) -> (i32, i32) {
    %c0_i32 = arith.constant 0 : i32
    %c0_i32_0 = arith.constant 0 : i32
    %c0_i32_1 = arith.constant 0 : i32
    return %c0_i32, %c0_i32_0 : i32, i32
  }
  func.func @transform_4(%arg0: i32, %arg1: i32) -> (i32, i32) {
    %c0_i32 = arith.constant 0 : i32
    %c0_i32_0 = arith.constant 0 : i32
    %c0_i32_1 = arith.constant 0 : i32
    return %c0_i32, %c0_i32_0 : i32, i32
  }
  func.func @transform_5(%arg0: i32, %arg1: i32) -> (i32, i32) {
    %c0_i32 = arith.constant 0 : i32
    %c0_i32_0 = arith.constant 0 : i32
    %c0_i32_1 = arith.constant 0 : i32
    return %c0_i32, %c0_i32_0 : i32, i32
  }
  func.func @transform_6(%arg0: i32, %arg1: i32) -> (i32, i32, i32) {
    %c0_i32 = arith.constant 0 : i32
    %c0_i32_0 = arith.constant 0 : i32
    return %arg0, %arg1, %c0_i32 : i32, i32, i32
  }
}

</mosaic_0001>

<llo_original>
// kernel: tpu_custom_call.1
$region0: #{tpu_custom_call.1}
  #allocation0 [shape = 'u32[]', space=smem, size = 0x4, offset = 0x4, fixed_abs, tag = 'smem constant byte address 0x4 - core index']
  #allocation1 [shape = 'u32[144,128]{1,0:T(1,128)}', space=vmem, size = 0x12000, scoped, tag = 'internal scratch']
  %s0 = inlined_call_operand.hbm [shape: f32[8], index: 0, kind: input, shape index: {}]
  %s1 = inlined_call_operand.hbm [shape: f32[2,512,128], index: 1, kind: input, shape index: {}]
  %s2 = inlined_call_operand.hbm [shape: bf16[128,128], index: 2, kind: input, shape index: {}]
  %s3 = inlined_call_operand.vmem [shape: f32[1,128], index: 3, kind: input, shape index: {}]
  %s4 = inlined_call_operand.hbm [shape: bf16[128,128], index: 4, kind: input, shape index: {}]
  %s5 = inlined_call_operand.vmem [shape: f32[1,128], index: 5, kind: input, shape index: {}]
  %s6 = inlined_call_operand.hbm [shape: f32[2,512,128], index: 6, kind: output, shape index: {}]
  %s7 = sld [smem:[#allocation0]]
  $region73: #{tpu_custom_call.1} parent=0
    _
  %s9 = ssub.s32 1, %s7
  %s10 = scalar_select 0, %s9, %s7
  $region1: #{tpu_custom_call.1} parent=0
    #allocation2 [shape = 'u8[512]{0}', space=smem, size = 0x200, scoped, tag = 'input window, operand 0, single buffered']
    #allocation3 [shape = 's32[2]{0}', space=sflag, size = 0x8, scoped, tag = 'scoped memory for tpu_custom_call.1']
    #allocation4 [shape = 's32[2]{0}', space=sflag, size = 0x8, scoped, tag = 'scoped memory for tpu_custom_call.1']
    #allocation5 [shape = 's32[2]{0}', space=sflag, size = 0x8, scoped, tag = 'scoped memory for tpu_custom_call.1']
    #allocation6 [shape = 'u8[524288]{0}', space=vmem, size = 0x80000, scoped, tag = 'input window, operand 1']
    #allocation7 [shape = 'u8[32768]{0}', space=vmem, size = 0x8000, scoped, tag = 'input window, operand 2, single buffered']
    #allocation8 [shape = 's32[1]{0}', space=sflag, size = 0x4, scoped, tag = 'scoped memory for tpu_custom_call.1']
    #allocation9 [shape = 'u8[32768]{0}', space=vmem, size = 0x8000, scoped, tag = 'input window, operand 4, single buffered']
    #allocation10 [shape = 'u8[524288]{0}', space=vmem, size = 0x80000, scoped, tag = 'output window, operand 0']
    %11 = vsyncpa [#allocation5], 0
    %12 = vsyncpa [#allocation3], 0
    %s13 = scalar_lea.sflag [#allocation3], 1
    %14 = vsyncpa %s13, 0
    %15 = vsyncpa [#allocation8], 0
    %16 = vsyncpa [#allocation4], 0
    %s17 = scalar_lea.sflag [#allocation4], 1
    %18 = vsyncpa %s17, 0
    loop: start=0, step=1, limit=4
    $region2: #{tpu_custom_call.1} parent=1 // loop_pre_header
      _
    $region3: #{tpu_custom_call.1} parent=1 // loop_header
      %s20 = sphi 0, %s24
      %p21 = scmp.ge.s32.totalorder %s20, 4
      %s27 = sphi 0, %s39
      %s28 = sphi 0, %s35
      %s29 = sphi 0, %s27
      %s30 = sphi 0, %s28
      %s31 = sphi 0, %s29
      %s32 = sphi 0, %s30
      %s40 = sphi 0, %s40
      %s42 = sphi 0, %s40
      %s43 = sphi 0, %s42
      %s57 = sphi 0, %s43
      %s65 = sphi 0, %s67
      %s68 = sphi 0, %s65
      %s69 = sphi 0, %s68
      %s85 = sphi 0, %s69
      %s89 = sphi 0, %s89
      %s91 = sphi 0, %s89
      %s92 = sphi 0, %s91
      %s106 = sphi 0, %s92
      %s110 = sphi 0, %s110
      %s112 = sphi 0, %s110
      %s113 = sphi 0, %s112
      %s127 = sphi 0, %s113
      %s131 = sphi 0, %s131
      %s133 = sphi 0, %s131
      %s134 = sphi 0, %s133
      %s148 = sphi 0, %s134
      %s152 = sphi 0, %s152
      %s154 = sphi 0, %s152
      %s155 = sphi 0, %s154
      %s169 = sphi 0, %s155
      %s177 = sphi 0, %s179
      %s180 = sphi 0, %s177
      %s181 = sphi 0, %s180
      %s197 = sphi 0, %s181
    $region4: #{tpu_custom_call.1} parent=1 // loop_header_branch
      %23 = sbr.rel (%p21) target = $region8
    $region5: #{tpu_custom_call.1} parent=1 // loop_body
      %s25 = ssub.s32 %s20, 1
      %s26 = ssub.s32 %s20, 2
      %s33 = sadd.s32 1, %s28
      %p34 = scmp.ge.s32.totalorder %s33, 1
      %s35 = scalar_select %p34, 0, %s33
      %s36 = sadd.s32 1, %s27
      %s37 = scalar_select %p34, %s36, %s27
      %p38 = scmp.ge.s32.totalorder %s37, 2
      %s39 = scalar_select %p38, 0, %s37
      %s41 = sadd.s32 %s40, 1
      %p44 = scmp.eq.s32.totalorder %s20, 1
      %p45 = scmp.ne.s32.totalorder %s40, %s42
      %p46 = scmp.eq.s32.totalorder %s20, 0
      %p47 = por %p45, %p46
      %p48 = scmp.ne.s32.totalorder %s40, %s42
      %p49 = scmp.eq.s32.totalorder %s25, 1
      %p50 = por %p48, %p49
      %p51 = scmp.ne.s32.totalorder %s42, %s43
      %p52 = scmp.eq.s32.totalorder %s25, 0
      %p53 = por %p51, %p52
      %p54 = scmp.ne.s32.totalorder %s42, %s43
      %p55 = scmp.eq.s32.totalorder %s26, 1
      %p56 = por %p54, %p55
      %p58 = scmp.ne.s32.totalorder %s43, %s57
      %p59 = scmp.eq.s32.totalorder %s26, 0
      %p60 = por %p58, %p59
      %s61 = ssub.s32 %s27, %s39
      %s62 = ssub.s32 %s28, %s35
      %s63 = sor.u32 %s61, %s62
      %p64 = scmp.eq.s32.totalorder %s63, 0
      %s66 = sadd.s32 %s65, 1
      %s67 = scalar_select %p64, %s65, %s66
      %p70 = pneg %p64
      %p71 = scmp.eq.s32.totalorder %s20, 1
      %p72 = por %p70, %p71
      %p73 = scmp.ne.s32.totalorder %s65, %s68
      %p74 = scmp.eq.s32.totalorder %s20, 0
      %p75 = por %p73, %p74
      %p76 = scmp.ne.s32.totalorder %s65, %s68
      %p77 = scmp.eq.s32.totalorder %s25, 1
      %p78 = por %p76, %p77
      %p79 = scmp.ne.s32.totalorder %s68, %s69
      %p80 = scmp.eq.s32.totalorder %s25, 0
      %p81 = por %p79, %p80
      %p82 = scmp.ne.s32.totalorder %s68, %s69
      %p83 = scmp.eq.s32.totalorder %s26, 1
      %p84 = por %p82, %p83
      %p86 = scmp.ne.s32.totalorder %s69, %s85
      %p87 = scmp.eq.s32.totalorder %s26, 0
      %p88 = por %p86, %p87
      %s90 = sadd.s32 %s89, 1
      %p93 = scmp.eq.s32.totalorder %s20, 1
      %p94 = scmp.ne.s32.totalorder %s89, %s91
      %p95 = scmp.eq.s32.totalorder %s20, 0
      %p96 = por %p94, %p95
      %p97 = scmp.ne.s32.totalorder %s89, %s91
      %p98 = scmp.eq.s32.totalorder %s25, 1
      %p99 = por %p97, %p98
      %p100 = scmp.ne.s32.totalorder %s91, %s92
      %p101 = scmp.eq.s32.totalorder %s25, 0
      %p102 = por %p100, %p101
      %p103 = scmp.ne.s32.totalorder %s91, %s92
      %p104 = scmp.eq.s32.totalorder %s26, 1
      %p105 = por %p103, %p104
      %p107 = scmp.ne.s32.totalorder %s92, %s106
      %p108 = scmp.eq.s32.totalorder %s26, 0
      %p109 = por %p107, %p108
      %s111 = sadd.s32 %s110, 1
      %p114 = scmp.eq.s32.totalorder %s20, 1
      %p115 = scmp.ne.s32.totalorder %s110, %s112
      %p116 = scmp.eq.s32.totalorder %s20, 0
      %p117 = por %p115, %p116
      %p118 = scmp.ne.s32.totalorder %s110, %s112
      %p119 = scmp.eq.s32.totalorder %s25, 1
      %p120 = por %p118, %p119
      %p121 = scmp.ne.s32.totalorder %s112, %s113
      %p122 = scmp.eq.s32.totalorder %s25, 0
      %p123 = por %p121, %p122
      %p124 = scmp.ne.s32.totalorder %s112, %s113
      %p125 = scmp.eq.s32.totalorder %s26, 1
      %p126 = por %p124, %p125
      %p128 = scmp.ne.s32.totalorder %s113, %s127
      %p129 = scmp.eq.s32.totalorder %s26, 0
      %p130 = por %p128, %p129
      %s132 = sadd.s32 %s131, 1
      %p135 = scmp.eq.s32.totalorder %s20, 1
      %p136 = scmp.ne.s32.totalorder %s131, %s133
      %p137 = scmp.eq.s32.totalorder %s20, 0
      %p138 = por %p136, %p137
      %p139 = scmp.ne.s32.totalorder %s131, %s133
      %p140 = scmp.eq.s32.totalorder %s25, 1
      %p141 = por %p139, %p140
      %p142 = scmp.ne.s32.totalorder %s133, %s134
      %p143 = scmp.eq.s32.totalorder %s25, 0
      %p144 = por %p142, %p143
      %p145 = scmp.ne.s32.totalorder %s133, %s134
      %p146 = scmp.eq.s32.totalorder %s26, 1
      %p147 = por %p145, %p146
      %p149 = scmp.ne.s32.totalorder %s134, %s148
      %p150 = scmp.eq.s32.totalorder %s26, 0
      %p151 = por %p149, %p150
      %s153 = sadd.s32 %s152, 1
      %p156 = scmp.eq.s32.totalorder %s20, 1
      %p157 = scmp.ne.s32.totalorder %s152, %s154
      %p158 = scmp.eq.s32.totalorder %s20, 0
      %p159 = por %p157, %p158
      %p160 = scmp.ne.s32.totalorder %s152, %s154
      %p161 = scmp.eq.s32.totalorder %s25, 1
      %p162 = por %p160, %p161
      %p163 = scmp.ne.s32.totalorder %s154, %s155
      %p164 = scmp.eq.s32.totalorder %s25, 0
      %p165 = por %p163, %p164
      %p166 = scmp.ne.s32.totalorder %s154, %s155
      %p167 = scmp.eq.s32.totalorder %s26, 1
      %p168 = por %p166, %p167
      %p170 = scmp.ne.s32.totalorder %s155, %s169
      %p171 = scmp.eq.s32.totalorder %s26, 0
      %p172 = por %p170, %p171
      %s173 = ssub.s32 %s27, %s39
      %s174 = ssub.s32 %s28, %s35
      %s175 = sor.u32 %s173, %s174
      %p176 = scmp.eq.s32.totalorder %s175, 0
      %s178 = sadd.s32 %s177, 1
      %s179 = scalar_select %p176, %s177, %s178
      %p182 = pneg %p176
      %p183 = scmp.eq.s32.totalorder %s20, 1
      %p184 = por %p182, %p183
      %p185 = scmp.ne.s32.totalorder %s177, %s180
      %p186 = scmp.eq.s32.totalorder %s20, 0
      %p187 = por %p185, %p186
      %p188 = scmp.ne.s32.totalorder %s177, %s180
      %p189 = scmp.eq.s32.totalorder %s25, 1
      %p190 = por %p188, %p189
      %p191 = scmp.ne.s32.totalorder %s180, %s181
      %p192 = scmp.eq.s32.totalorder %s25, 0
      %p193 = por %p191, %p192
      %p194 = scmp.ne.s32.totalorder %s180, %s181
      %p195 = scmp.eq.s32.totalorder %s26, 1
      %p196 = por %p194, %p195
      %p198 = scmp.ne.s32.totalorder %s181, %s197
      %p199 = scmp.eq.s32.totalorder %s26, 0
      %p200 = por %p198, %p199
      %p201 = scmp.le.s32.totalorder 1, %s20
      %p202 = scmp.lt.s32.totalorder %s20, 3
      %p203 = pnand %p201, %p202
      %p204 = pneg %p203
      // Predicated region
      $region9: #{tpu_custom_call.1} parent=5 // pred_check
        _
      $region10: #{tpu_custom_call.1} parent=5 // pred_check_branch
        %206 = sbr.rel (%p203) target = $region12
      $region11: #{tpu_custom_call.1} parent=5 // pred_region
        %s207 = ssub.s32 %s20, 1
        // Predicated region
        $region13: #{tpu_custom_call.1} parent=11 // pred_check
          %p208 = pneg %p53
        $region14: #{tpu_custom_call.1} parent=11 // pred_check_branch
          %210 = sbr.rel (%p208) target = $region16
        $region15: #{tpu_custom_call.1} parent=11 // pred_region
          %s212 = ssub.s32 16, 16
          %213 = vsyncadd [#allocation5], %s212
          %216 = dma.hbm_to_smem %s0, 16, [#allocation2], [#allocation5]
        $region16: #{tpu_custom_call.1} parent=11 // pred_fallthru
          _
        // Predicated region
        $region17: #{tpu_custom_call.1} parent=11 // pred_check
          %p217 = pneg %p102
        $region18: #{tpu_custom_call.1} parent=11 // pred_check_branch
          %219 = sbr.rel (%p217) target = $region20
        $region19: #{tpu_custom_call.1} parent=11 // pred_region
          %s221 = ssub.s32 1024, 1024
          %222 = vsyncadd [#allocation8], %s221
          %s223 = sshll.u32 [#allocation7], 4
          %s224 = int_to_ptr.vmem [resolvable:$true] %s223
          %229 = dma.hbm_to_vmem [thread:$0]  %s2, 1024, %s224, [#allocation8], 64, 64, 4
        $region20: #{tpu_custom_call.1} parent=11 // pred_fallthru
          _
        // Predicated region
        $region21: #{tpu_custom_call.1} parent=11 // pred_check
          %p230 = pneg %p123
        $region22: #{tpu_custom_call.1} parent=11 // pred_check_branch
          %232 = sbr.rel (%p230) target = $region24
        $region23: #{tpu_custom_call.1} parent=11 // pred_region
          _
        $region24: #{tpu_custom_call.1} parent=11 // pred_fallthru
          _
        // Predicated region
        $region25: #{tpu_custom_call.1} parent=11 // pred_check
          %p233 = pneg %p144
        $region26: #{tpu_custom_call.1} parent=11 // pred_check_branch
          %235 = sbr.rel (%p233) target = $region28
        $region27: #{tpu_custom_call.1} parent=11 // pred_region
          %s237 = ssub.s32 1024, 1024
          %238 = vsyncadd [#allocation8], %s237
          %s239 = sshll.u32 [#allocation9], 4
          %s240 = int_to_ptr.vmem [resolvable:$true] %s239
          %245 = dma.hbm_to_vmem [thread:$0]  %s4, 1024, %s240, [#allocation8], 64, 64, 4
        $region28: #{tpu_custom_call.1} parent=11 // pred_fallthru
          _
        // Predicated region
        $region29: #{tpu_custom_call.1} parent=11 // pred_check
          %p246 = pneg %p165
        $region30: #{tpu_custom_call.1} parent=11 // pred_check_branch
          %248 = sbr.rel (%p246) target = $region32
        $region31: #{tpu_custom_call.1} parent=11 // pred_region
          _
        $region32: #{tpu_custom_call.1} parent=11 // pred_fallthru
          _
      $region12: #{tpu_custom_call.1} parent=5 // pred_fallthru
        _
      %p249 = scmp.lt.s32.totalorder %s20, 2
      // Predicated region
      $region33: #{tpu_custom_call.1} parent=5 // pred_check
        %p250 = pneg %p249
      $region34: #{tpu_custom_call.1} parent=5 // pred_check_branch
        %252 = sbr.rel (%p250) target = $region36
      $region35: #{tpu_custom_call.1} parent=5 // pred_region
        // Predicated region
        $region37: #{tpu_custom_call.1} parent=35 // pred_check
          %p253 = pneg %p75
        $region38: #{tpu_custom_call.1} parent=35 // pred_check_branch
          %255 = sbr.rel (%p253) target = $region40
        $region39: #{tpu_custom_call.1} parent=35 // pred_region
          %s256 = sand.u32 %s65, 1
          %s257 = scalar_lea.sflag [#allocation3], %s256
          %s258 = sand.u32 %s65, 1
          %s259 = smul.addr %s258, 512
          %s260 = scalar_lea.vmem [#allocation6], %s259
          %s261 = smul.u32 64, %s28
          %s263 = ssub.s32 8192, 8192
          %264 = vsyncadd %s257, %s263
          %s265 = smul.addr %s27, 64
          %s266 = sadd.s32 %s261, %s265
          %s267 = smul.addr %s266, 128
          %s268 = scalar_lea.hbm %s1, %s267
          %s269 = sshll.u32 %s260, 4
          %s270 = int_to_ptr.vmem [resolvable:$true] %s269
          %275 = dma.hbm_to_vmem [thread:$0]  %s268, 8192, %s270, %s257, 128, 128, 8
        $region40: #{tpu_custom_call.1} parent=35 // pred_fallthru
          _
      $region36: #{tpu_custom_call.1} parent=5 // pred_fallthru
        _
      %p276 = scmp.le.s32.totalorder 1, %s20
      %p277 = scmp.lt.s32.totalorder %s20, 3
      %p278 = pnand %p276, %p277
      %p279 = pneg %p278
      // Predicated region
      $region41: #{tpu_custom_call.1} parent=5 // pred_check
        _
      $region42: #{tpu_custom_call.1} parent=5 // pred_check_branch
        %281 = sbr.rel (%p278) target = $region44
      $region43: #{tpu_custom_call.1} parent=5 // pred_region
        %s282 = ssub.s32 %s20, 1
        // Predicated region
        $region45: #{tpu_custom_call.1} parent=43 // pred_check
          %p283 = pneg %p53
        $region46: #{tpu_custom_call.1} parent=43 // pred_check_branch
          %285 = sbr.rel (%p283) target = $region48
        $region47: #{tpu_custom_call.1} parent=43 // pred_region
          %286 = dma.done [#allocation5], 16
        $region48: #{tpu_custom_call.1} parent=43 // pred_fallthru
          _
        %s287 = sand.u32 %s68, 1
        %s288 = scalar_lea.sflag [#allocation3], %s287
        %s289 = sand.u32 %s68, 1
        %s290 = smul.addr %s289, 512
        %s291 = scalar_lea.vmem [#allocation6], %s290
        // Predicated region
        $region49: #{tpu_custom_call.1} parent=43 // pred_check
          %p292 = pneg %p81
        $region50: #{tpu_custom_call.1} parent=43 // pred_check_branch
          %294 = sbr.rel (%p292) target = $region52
        $region51: #{tpu_custom_call.1} parent=43 // pred_region
          %295 = dma.done %s288, 8192
        $region52: #{tpu_custom_call.1} parent=43 // pred_fallthru
          _
        // Predicated region
        $region53: #{tpu_custom_call.1} parent=43 // pred_check
          %p296 = pneg %p102
        $region54: #{tpu_custom_call.1} parent=43 // pred_check_branch
          %298 = sbr.rel (%p296) target = $region56
        $region55: #{tpu_custom_call.1} parent=43 // pred_region
          %299 = dma.done [#allocation8], 1024
        $region56: #{tpu_custom_call.1} parent=43 // pred_fallthru
          _
        // Predicated region
        $region57: #{tpu_custom_call.1} parent=43 // pred_check
          %p300 = pneg %p144
        $region58: #{tpu_custom_call.1} parent=43 // pred_check_branch
          %302 = sbr.rel (%p300) target = $region60
        $region59: #{tpu_custom_call.1} parent=43 // pred_region
          %303 = dma.done [#allocation8], 1024
        $region60: #{tpu_custom_call.1} parent=43 // pred_fallthru
          _
        %304 = sfence
        %p305 = pneg %p53
        %p306 = pneg %p50
        %s307 = sand.u32 %s68, 1
        %s308 = scalar_lea.sflag [#allocation3], %s307
        %s309 = sand.u32 %s68, 1
        %s310 = smul.addr %s309, 512
        %s311 = scalar_lea.vmem [#allocation6], %s310
        %p312 = pneg %p81
        %p313 = pneg %p78
        %p314 = pneg %p102
        %p315 = pneg %p99
        %p316 = pneg %p123
        %p317 = pneg %p120
        %p318 = pneg %p144
        %p319 = pneg %p141
        %p320 = pneg %p165
        %p321 = pneg %p162
        %p322 = pneg %p193
        %p323 = pneg %p190
        %s324 = sand.u32 %s180, 1
        %s325 = scalar_lea.sflag [#allocation4], %s324
        %s326 = sand.u32 %s180, 1
        %s327 = smul.addr %s326, 512
        %s328 = scalar_lea.vmem [#allocation10], %s327
        %s329 = smul.u32 64, %s30
        %s330 = smul.u32 64, %s30
        %s332 = smul.u32 %s29, 4
        %s333 = sld [smem:[#allocation2 + %s332]]
        %s334 = sadd.s32 %s332, 1
        %s335 = sld [smem:[#allocation2 + %s334]]
        %s336 = sadd.s32 %s332, 2
        %s337 = sld [smem:[#allocation2 + %s336]]
        %s338 = sadd.s32 %s332, 3
        %s339 = sld [smem:[#allocation2 + %s338]]
        %v340 = vld [vmem:[%s291] sm:$0xff]
        %v341 = vld [vmem:[%s291 + $0x8] sm:$0xff]
        %v342 = vld [vmem:[%s291 + $0x10] sm:$0xff]
        %v343 = vld [vmem:[%s291 + $0x18] sm:$0xff]
        %v344 = vld [vmem:[%s291 + $0x20] sm:$0xff]
        %v345 = vld [vmem:[%s291 + $0x28] sm:$0xff]
        %v346 = vld [vmem:[%s291 + $0x30] sm:$0xff]
        %v347 = vld [vmem:[%s291 + $0x38] sm:$0xff]
        %v348 = vld [vmem:[%s291 + $0x40] sm:$0xff]
        %v349 = vld [vmem:[%s291 + $0x48] sm:$0xff]
        %v350 = vld [vmem:[%s291 + $0x50] sm:$0xff]
        %v351 = vld [vmem:[%s291 + $0x58] sm:$0xff]
        %v352 = vld [vmem:[%s291 + $0x60] sm:$0xff]
        %v353 = vld [vmem:[%s291 + $0x68] sm:$0xff]
        %v354 = vld [vmem:[%s291 + $0x70] sm:$0xff]
        %v355 = vld [vmem:[%s291 + $0x78] sm:$0xff]
        %v356 = vld [vmem:[%s291 + $0x80] sm:$0xff]
        %v357 = vld [vmem:[%s291 + $0x88] sm:$0xff]
        %v358 = vld [vmem:[%s291 + $0x90] sm:$0xff]
        %v359 = vld [vmem:[%s291 + $0x98] sm:$0xff]
        %v360 = vld [vmem:[%s291 + $0xa0] sm:$0xff]
        %v361 = vld [vmem:[%s291 + $0xa8] sm:$0xff]
        %v362 = vld [vmem:[%s291 + $0xb0] sm:$0xff]
        %v363 = vld [vmem:[%s291 + $0xb8] sm:$0xff]
        %v364 = vld [vmem:[%s291 + $0xc0] sm:$0xff]
        %v365 = vld [vmem:[%s291 + $0xc8] sm:$0xff]
        %v366 = vld [vmem:[%s291 + $0xd0] sm:$0xff]
        %v367 = vld [vmem:[%s291 + $0xd8] sm:$0xff]
        %v368 = vld [vmem:[%s291 + $0xe0] sm:$0xff]
        %v369 = vld [vmem:[%s291 + $0xe8] sm:$0xff]
        %v370 = vld [vmem:[%s291 + $0xf0] sm:$0xff]
        %v371 = vld [vmem:[%s291 + $0xf8] sm:$0xff]
        %v372 = vld [vmem:[%s291 + $0x100] sm:$0xff]
        %v373 = vld [vmem:[%s291 + $0x108] sm:$0xff]
        %v374 = vld [vmem:[%s291 + $0x110] sm:$0xff]
        %v375 = vld [vmem:[%s291 + $0x118] sm:$0xff]
        %v376 = vld [vmem:[%s291 + $0x120] sm:$0xff]
        %v377 = vld [vmem:[%s291 + $0x128] sm:$0xff]
        %v378 = vld [vmem:[%s291 + $0x130] sm:$0xff]
        %v379 = vld [vmem:[%s291 + $0x138] sm:$0xff]
        %v380 = vld [vmem:[%s291 + $0x140] sm:$0xff]
        %v381 = vld [vmem:[%s291 + $0x148] sm:$0xff]
        %v382 = vld [vmem:[%s291 + $0x150] sm:$0xff]
        %v383 = vld [vmem:[%s291 + $0x158] sm:$0xff]
        %v384 = vld [vmem:[%s291 + $0x160] sm:$0xff]
        %v385 = vld [vmem:[%s291 + $0x168] sm:$0xff]
        %v386 = vld [vmem:[%s291 + $0x170] sm:$0xff]
        %v387 = vld [vmem:[%s291 + $0x178] sm:$0xff]
        %v388 = vld [vmem:[%s291 + $0x180] sm:$0xff]
        %v389 = vld [vmem:[%s291 + $0x188] sm:$0xff]
        %v390 = vld [vmem:[%s291 + $0x190] sm:$0xff]
        %v391 = vld [vmem:[%s291 + $0x198] sm:$0xff]
        %v392 = vld [vmem:[%s291 + $0x1a0] sm:$0xff]
        %v393 = vld [vmem:[%s291 + $0x1a8] sm:$0xff]
        %v394 = vld [vmem:[%s291 + $0x1b0] sm:$0xff]
        %v395 = vld [vmem:[%s291 + $0x1b8] sm:$0xff]
        %v396 = vld [vmem:[%s291 + $0x1c0] sm:$0xff]
        %v397 = vld [vmem:[%s291 + $0x1c8] sm:$0xff]
        %v398 = vld [vmem:[%s291 + $0x1d0] sm:$0xff]
        %v399 = vld [vmem:[%s291 + $0x1d8] sm:$0xff]
        %v400 = vld [vmem:[%s291 + $0x1e0] sm:$0xff]
        %v401 = vld [vmem:[%s291 + $0x1e8] sm:$0xff]
        %v402 = vld [vmem:[%s291 + $0x1f0] sm:$0xff]
        %v403 = vld [vmem:[%s291 + $0x1f8] sm:$0xff]
        %v404 = vstv %s333
        %v405 = vmul.f32 %v404, %v340
        %v406 = vmul.f32 %v404, %v341
        %v407 = vmul.f32 %v404, %v342
        %v408 = vmul.f32 %v404, %v343
        %v409 = vmul.f32 %v404, %v344
        %v410 = vmul.f32 %v404, %v345
        %v411 = vmul.f32 %v404, %v346
        %v412 = vmul.f32 %v404, %v347
        %v413 = vmul.f32 %v404, %v348
        %v414 = vmul.f32 %v404, %v349
        %v415 = vmul.f32 %v404, %v350
        %v416 = vmul.f32 %v404, %v351
        %v417 = vmul.f32 %v404, %v352
        %v418 = vmul.f32 %v404, %v353
        %v419 = vmul.f32 %v404, %v354
        %v420 = vmul.f32 %v404, %v355
        %v421 = vmul.f32 %v404, %v356
        %v422 = vmul.f32 %v404, %v357
        %v423 = vmul.f32 %v404, %v358
        %v424 = vmul.f32 %v404, %v359
        %v425 = vmul.f32 %v404, %v360
        %v426 = vmul.f32 %v404, %v361
        %v427 = vmul.f32 %v404, %v362
        %v428 = vmul.f32 %v404, %v363
        %v429 = vmul.f32 %v404, %v364
        %v430 = vmul.f32 %v404, %v365
        %v431 = vmul.f32 %v404, %v366
        %v432 = vmul.f32 %v404, %v367
        %v433 = vmul.f32 %v404, %v368
        %v434 = vmul.f32 %v404, %v369
        %v435 = vmul.f32 %v404, %v370
        %v436 = vmul.f32 %v404, %v371
        %v437 = vmul.f32 %v404, %v372
        %v438 = vmul.f32 %v404, %v373
        %v439 = vmul.f32 %v404, %v374
        %v440 = vmul.f32 %v404, %v375
        %v441 = vmul.f32 %v404, %v376
        %v442 = vmul.f32 %v404, %v377
        %v443 = vmul.f32 %v404, %v378
        %v444 = vmul.f32 %v404, %v379
        %v445 = vmul.f32 %v404, %v380
        %v446 = vmul.f32 %v404, %v381
        %v447 = vmul.f32 %v404, %v382
        %v448 = vmul.f32 %v404, %v383
        %v449 = vmul.f32 %v404, %v384
        %v450 = vmul.f32 %v404, %v385
        %v451 = vmul.f32 %v404, %v386
        %v452 = vmul.f32 %v404, %v387
        %v453 = vmul.f32 %v404, %v388
        %v454 = vmul.f32 %v404, %v389
        %v455 = vmul.f32 %v404, %v390
        %v456 = vmul.f32 %v404, %v391
        %v457 = vmul.f32 %v404, %v392
        %v458 = vmul.f32 %v404, %v393
        %v459 = vmul.f32 %v404, %v394
        %v460 = vmul.f32 %v404, %v395
        %v461 = vmul.f32 %v404, %v396
        %v462 = vmul.f32 %v404, %v397
        %v463 = vmul.f32 %v404, %v398
        %v464 = vmul.f32 %v404, %v399
        %v465 = vmul.f32 %v404, %v400
        %v466 = vmul.f32 %v404, %v401
        %v467 = vmul.f32 %v404, %v402
        %v468 = vmul.f32 %v404, %v403
        %v469 = vpack.c.bf16 %v406, %v405
        %v470 = vpack.c.bf16 %v408, %v407
        %v471 = vpack.c.bf16 %v410, %v409
        %v472 = vpack.c.bf16 %v412, %v411
        %v473 = vpack.c.bf16 %v414, %v413
        %v474 = vpack.c.bf16 %v416, %v415
        %v475 = vpack.c.bf16 %v418, %v417
        %v476 = vpack.c.bf16 %v420, %v419
        %v477 = vpack.c.bf16 %v422, %v421
        %v478 = vpack.c.bf16 %v424, %v423
        %v479 = vpack.c.bf16 %v426, %v425
        %v480 = vpack.c.bf16 %v428, %v427
        %v481 = vpack.c.bf16 %v430, %v429
        %v482 = vpack.c.bf16 %v432, %v431
        %v483 = vpack.c.bf16 %v434, %v433
        %v484 = vpack.c.bf16 %v436, %v435
        %v485 = vpack.c.bf16 %v438, %v437
        %v486 = vpack.c.bf16 %v440, %v439
        %v487 = vpack.c.bf16 %v442, %v441
        %v488 = vpack.c.bf16 %v444, %v443
        %v489 = vpack.c.bf16 %v446, %v445
        %v490 = vpack.c.bf16 %v448, %v447
        %v491 = vpack.c.bf16 %v450, %v449
        %v492 = vpack.c.bf16 %v452, %v451
        %v493 = vpack.c.bf16 %v454, %v453
        %v494 = vpack.c.bf16 %v456, %v455
        %v495 = vpack.c.bf16 %v458, %v457
        %v496 = vpack.c.bf16 %v460, %v459
        %v497 = vpack.c.bf16 %v462, %v461
        %v498 = vpack.c.bf16 %v464, %v463
        %v499 = vpack.c.bf16 %v466, %v465
        %v500 = vpack.c.bf16 %v468, %v467
        %v501 = vld [vmem:[#allocation7] sm:$0xf]
        %v502 = vld [vmem:[#allocation7 + $0x4] sm:$0xf]
        %v503 = vld [vmem:[#allocation7 + $0x8] sm:$0xf]
        %v504 = vld [vmem:[#allocation7 + $0xc] sm:$0xf]
        %v505 = vld [vmem:[#allocation7 + $0x10] sm:$0xf]
        %v506 = vld [vmem:[#allocation7 + $0x14] sm:$0xf]
        %v507 = vld [vmem:[#allocation7 + $0x18] sm:$0xf]
        %v508 = vld [vmem:[#allocation7 + $0x1c] sm:$0xf]
        %v509 = vld [vmem:[#allocation7 + $0x20] sm:$0xf]
        %v510 = vld [vmem:[#allocation7 + $0x24] sm:$0xf]
        %v511 = vld [vmem:[#allocation7 + $0x28] sm:$0xf]
        %v512 = vld [vmem:[#allocation7 + $0x2c] sm:$0xf]
        %v513 = vld [vmem:[#allocation7 + $0x30] sm:$0xf]
        %v514 = vld [vmem:[#allocation7 + $0x34] sm:$0xf]
        %v515 = vld [vmem:[#allocation7 + $0x38] sm:$0xf]
        %v516 = vld [vmem:[#allocation7 + $0x3c] sm:$0xf]
        %v517 = vld [vmem:[%s3] sm:$0x1]
        %v518 = vstv %s339
        %v519 = vadd.f32 %v517, %v518
        %v521 = vlaneseq
        %v522 = vshrl.u32 %v521, 7
        %v523 = vsub.s32 0, %v522
        %v524 = vrot.slane %v519, %v523
        %v542 = vunpack.c.l.b16 %v501
        %v543 = vunpack.c.l.b16 %v502
        %v544 = vunpack.c.l.b16 %v503
        %v545 = vunpack.c.l.b16 %v504
        %v546 = vunpack.c.l.b16 %v505
        %v547 = vunpack.c.l.b16 %v506
        %v548 = vunpack.c.l.b16 %v507
        %v549 = vunpack.c.l.b16 %v508
        %v550 = vunpack.c.l.b16 %v509
        %v551 = vunpack.c.l.b16 %v510
        %v552 = vunpack.c.l.b16 %v511
        %v553 = vunpack.c.l.b16 %v512
        %v554 = vunpack.c.l.b16 %v513
        %v555 = vunpack.c.l.b16 %v514
        %v556 = vunpack.c.l.b16 %v515
        %v557 = vunpack.c.l.b16 %v516
        %v558 = vpack.c.b16 %v543, %v542
        %v559 = vpack.c.b16 %v545, %v544
        %v560 = vpack.c.b16 %v547, %v546
        %v561 = vpack.c.b16 %v549, %v548
        %v562 = vpack.c.b16 %v551, %v550
        %v563 = vpack.c.b16 %v553, %v552
        %v564 = vpack.c.b16 %v555, %v554
        %v565 = vpack.c.b16 %v557, %v556
        %574 = vmatprep.subr.bf16.mxu0 0
        %575 = vmatpush1.bf16.msra.mxu0 %v558
        %576 = vmatprep.subr.bf16.mxu0 0
        %577 = vmatpush1.bf16.msra.mxu0 %v559
        %578 = vmatprep.subr.bf16.mxu0 0
        %579 = vmatpush1.bf16.msra.mxu0 %v560
        %580 = vmatprep.subr.bf16.mxu0 0
        %581 = vmatpush1.bf16.msra.mxu0 %v561
        %582 = vmatprep.subr.bf16.mxu0 0
        %583 = vmatpush1.bf16.msra.mxu0 %v562
        %584 = vmatprep.subr.bf16.mxu0 0
        %585 = vmatpush1.bf16.msra.mxu0 %v563
        %586 = vmatprep.subr.bf16.mxu0 0
        %587 = vmatpush1.bf16.msra.mxu0 %v564
        %588 = vmatprep.subr.bf16.mxu0 0
        %589 = vmatpush1.bf16.msra.mxu0 %v565
        %590 = vmatprep.subr.bf16.mxu0 0
        %591 = vmatpush1.bf16.msra.mxu0 0
        %592 = vmatprep.subr.bf16.mxu0 0
        %593 = vmatpush1.bf16.msra.mxu0 0
        %594 = vmatprep.subr.bf16.mxu0 0
        %595 = vmatpush1.bf16.msra.mxu0 0
        %596 = vmatprep.subr.bf16.mxu0 0
        %597 = vmatpush1.bf16.msra.mxu0 0
        %598 = vmatprep.subr.bf16.mxu0 0
        %599 = vmatpush1.bf16.msra.mxu0 0
        %600 = vmatprep.subr.bf16.mxu0 0
        %601 = vmatpush1.bf16.msra.mxu0 0
        %602 = vmatprep.subr.bf16.mxu0 0
        %603 = vmatpush1.bf16.msra.mxu0 0
        %604 = vmatprep.subr.bf16.mxu0 0
        %605 = vmatpush1.bf16.msra.mxu0 0
        %606 = vmatprep.mubr.bf16.mxu0 0
        %607 = vmatmul.mubr.bf16.gmra.mrb[0].mxu0 %v469
        %v608 = vpop.f32.mrb[0].mxu0
        %v609 = vadd.f32 %v524, %v608
        %v610 = vpop.f32.mrb[0].mxu0
        %v611 = vpop.f32.mrb[0].mxu0
        %v612 = vadd.f32 %v524, %v611
        %v613 = vpop.f32.mrb[0].mxu0
        %614 = vmatprep.mubr.bf16.mxu0 0
        %615 = vmatmul.mubr.bf16.gmra.mrb[0].mxu0 %v470
        %v616 = vpop.f32.mrb[0].mxu0
        %v617 = vadd.f32 %v524, %v616
        %v618 = vpop.f32.mrb[0].mxu0
        %v619 = vpop.f32.mrb[0].mxu0
        %v620 = vadd.f32 %v524, %v619
        %v621 = vpop.f32.mrb[0].mxu0
        %622 = vmatprep.mubr.bf16.mxu0 0
        %623 = vmatmul.mubr.bf16.gmra.mrb[0].mxu0 %v471
        %v624 = vpop.f32.mrb[0].mxu0
        %v625 = vadd.f32 %v524, %v624
        %v626 = vpop.f32.mrb[0].mxu0
        %v627 = vpop.f32.mrb[0].mxu0
        %v628 = vadd.f32 %v524, %v627
        %v629 = vpop.f32.mrb[0].mxu0
        %630 = vmatprep.mubr.bf16.mxu0 0
        %631 = vmatmul.mubr.bf16.gmra.mrb[0].mxu0 %v472
        %v632 = vpop.f32.mrb[0].mxu0
        %v633 = vadd.f32 %v524, %v632
        %v634 = vpop.f32.mrb[0].mxu0
        %v635 = vpop.f32.mrb[0].mxu0
        %v636 = vadd.f32 %v524, %v635
        %v637 = vpop.f32.mrb[0].mxu0
        %638 = vmatprep.mubr.bf16.mxu0 0
        %639 = vmatmul.mubr.bf16.gmra.mrb[0].mxu0 %v473
        %v640 = vpop.f32.mrb[0].mxu0
        %v641 = vadd.f32 %v524, %v640
        %v642 = vpop.f32.mrb[0].mxu0
        %v643 = vpop.f32.mrb[0].mxu0
        %v644 = vadd.f32 %v524, %v643
        %v645 = vpop.f32.mrb[0].mxu0
        %646 = vmatprep.mubr.bf16.mxu0 0
        %647 = vmatmul.mubr.bf16.gmra.mrb[0].mxu0 %v474
        %v648 = vpop.f32.mrb[0].mxu0
        %v649 = vadd.f32 %v524, %v648
        %v650 = vpop.f32.mrb[0].mxu0
        %v651 = vpop.f32.mrb[0].mxu0
        %v652 = vadd.f32 %v524, %v651
        %v653 = vpop.f32.mrb[0].mxu0
        %654 = vmatprep.mubr.bf16.mxu0 0
        %655 = vmatmul.mubr.bf16.gmra.mrb[0].mxu0 %v475
        %v656 = vpop.f32.mrb[0].mxu0
        %v657 = vadd.f32 %v524, %v656
        %v658 = vpop.f32.mrb[0].mxu0
        %v659 = vpop.f32.mrb[0].mxu0
        %v660 = vadd.f32 %v524, %v659
        %v661 = vpop.f32.mrb[0].mxu0
        %662 = vmatprep.mubr.bf16.mxu0 0
        %663 = vmatmul.mubr.bf16.gmra.mrb[0].mxu0 %v476
        %v664 = vpop.f32.mrb[0].mxu0
        %v665 = vadd.f32 %v524, %v664
        %v666 = vpop.f32.mrb[0].mxu0
        %v667 = vpop.f32.mrb[0].mxu0
        %v668 = vadd.f32 %v524, %v667
        %v669 = vpop.f32.mrb[0].mxu0
        %670 = vmatprep.mubr.bf16.mxu0 0
        %671 = vmatmul.mubr.bf16.gmra.mrb[0].mxu0 %v477
        %v672 = vpop.f32.mrb[0].mxu0
        %v673 = vadd.f32 %v524, %v672
        %v674 = vpop.f32.mrb[0].mxu0
        %v675 = vpop.f32.mrb[0].mxu0
        %v676 = vadd.f32 %v524, %v675
        %v677 = vpop.f32.mrb[0].mxu0
        %678 = vmatprep.mubr.bf16.mxu0 0
        %679 = vmatmul.mubr.bf16.gmra.mrb[0].mxu0 %v478
        %v680 = vpop.f32.mrb[0].mxu0
        %v681 = vadd.f32 %v524, %v680
        %v682 = vpop.f32.mrb[0].mxu0
        %v683 = vpop.f32.mrb[0].mxu0
        %v684 = vadd.f32 %v524, %v683
        %v685 = vpop.f32.mrb[0].mxu0
        %686 = vmatprep.mubr.bf16.mxu0 0
        %687 = vmatmul.mubr.bf16.gmra.mrb[0].mxu0 %v479
        %v688 = vpop.f32.mrb[0].mxu0
        %v689 = vadd.f32 %v524, %v688
        %v690 = vpop.f32.mrb[0].mxu0
        %v691 = vpop.f32.mrb[0].mxu0
        %v692 = vadd.f32 %v524, %v691
        %v693 = vpop.f32.mrb[0].mxu0
        %694 = vmatprep.mubr.bf16.mxu0 0
        %695 = vmatmul.mubr.bf16.gmra.mrb[0].mxu0 %v480
        %v696 = vpop.f32.mrb[0].mxu0
        %v697 = vadd.f32 %v524, %v696
        %v698 = vpop.f32.mrb[0].mxu0
        %v699 = vpop.f32.mrb[0].mxu0
        %v700 = vadd.f32 %v524, %v699
        %v701 = vpop.f32.mrb[0].mxu0
        %702 = vmatprep.mubr.bf16.mxu0 0
        %703 = vmatmul.mubr.bf16.gmra.mrb[0].mxu0 %v481
        %v704 = vpop.f32.mrb[0].mxu0
        %v705 = vadd.f32 %v524, %v704
        %v706 = vpop.f32.mrb[0].mxu0
        %v707 = vpop.f32.mrb[0].mxu0
        %v708 = vadd.f32 %v524, %v707
        %v709 = vpop.f32.mrb[0].mxu0
        %710 = vmatprep.mubr.bf16.mxu0 0
        %711 = vmatmul.mubr.bf16.gmra.mrb[0].mxu0 %v482
        %v712 = vpop.f32.mrb[0].mxu0
        %v713 = vadd.f32 %v524, %v712
        %v714 = vpop.f32.mrb[0].mxu0
        %v715 = vpop.f32.mrb[0].mxu0
        %v716 = vadd.f32 %v524, %v715
        %v717 = vpop.f32.mrb[0].mxu0
        %718 = vmatprep.mubr.bf16.mxu0 0
        %719 = vmatmul.mubr.bf16.gmra.mrb[0].mxu0 %v483
        %v720 = vpop.f32.mrb[0].mxu0
        %v721 = vadd.f32 %v524, %v720
        %v722 = vpop.f32.mrb[0].mxu0
        %v723 = vpop.f32.mrb[0].mxu0
        %v724 = vadd.f32 %v524, %v723
        %v725 = vpop.f32.mrb[0].mxu0
        %726 = vmatprep.mubr.bf16.mxu0 0
        %727 = vmatmul.mubr.bf16.gmra.mrb[0].mxu0 %v484
        %v728 = vpop.f32.mrb[0].mxu0
        %v729 = vadd.f32 %v524, %v728
        %v730 = vpop.f32.mrb[0].mxu0
        %v731 = vpop.f32.mrb[0].mxu0
        %v732 = vadd.f32 %v524, %v731
        %v733 = vpop.f32.mrb[0].mxu0
        %734 = vmatprep.mubr.bf16.mxu0 0
        %735 = vmatmul.mubr.bf16.gmra.mrb[0].mxu0 %v485
        %v736 = vpop.f32.mrb[0].mxu0
        %v737 = vadd.f32 %v524, %v736
        %v738 = vpop.f32.mrb[0].mxu0
        %v739 = vpop.f32.mrb[0].mxu0
        %v740 = vadd.f32 %v524, %v739
        %v741 = vpop.f32.mrb[0].mxu0
        %742 = vmatprep.mubr.bf16.mxu0 0
        %743 = vmatmul.mubr.bf16.gmra.mrb[0].mxu0 %v486
        %v744 = vpop.f32.mrb[0].mxu0
        %v745 = vadd.f32 %v524, %v744
        %v746 = vpop.f32.mrb[0].mxu0
        %v747 = vpop.f32.mrb[0].mxu0
        %v748 = vadd.f32 %v524, %v747
        %v749 = vpop.f32.mrb[0].mxu0
        %750 = vmatprep.mubr.bf16.mxu0 0
        %751 = vmatmul.mubr.bf16.gmra.mrb[0].mxu0 %v487
        %v752 = vpop.f32.mrb[0].mxu0
        %v753 = vadd.f32 %v524, %v752
        %v754 = vpop.f32.mrb[0].mxu0
        %v755 = vpop.f32.mrb[0].mxu0
        %v756 = vadd.f32 %v524, %v755
        %v757 = vpop.f32.mrb[0].mxu0
        %758 = vmatprep.mubr.bf16.mxu0 0
        %759 = vmatmul.mubr.bf16.gmra.mrb[0].mxu0 %v488
        %v760 = vpop.f32.mrb[0].mxu0
        %v761 = vadd.f32 %v524, %v760
        %v762 = vpop.f32.mrb[0].mxu0
        %v763 = vpop.f32.mrb[0].mxu0
        %v764 = vadd.f32 %v524, %v763
        %v765 = vpop.f32.mrb[0].mxu0
        %766 = vmatprep.mubr.bf16.mxu0 0
        %767 = vmatmul.mubr.bf16.gmra.mrb[0].mxu0 %v489
        %v768 = vpop.f32.mrb[0].mxu0
        %v769 = vadd.f32 %v524, %v768
        %v770 = vpop.f32.mrb[0].mxu0
        %v771 = vpop.f32.mrb[0].mxu0
        %v772 = vadd.f32 %v524, %v771
        %v773 = vpop.f32.mrb[0].mxu0
        %774 = vmatprep.mubr.bf16.mxu0 0
        %775 = vmatmul.mubr.bf16.gmra.mrb[0].mxu0 %v490
        %v776 = vpop.f32.mrb[0].mxu0
        %v777 = vadd.f32 %v524, %v776
        %v778 = vpop.f32.mrb[0].mxu0
        %v779 = vpop.f32.mrb[0].mxu0
        %v780 = vadd.f32 %v524, %v779
        %v781 = vpop.f32.mrb[0].mxu0
        %782 = vmatprep.mubr.bf16.mxu0 0
        %783 = vmatmul.mubr.bf16.gmra.mrb[0].mxu0 %v491
        %v784 = vpop.f32.mrb[0].mxu0
        %v785 = vadd.f32 %v524, %v784
        %v786 = vpop.f32.mrb[0].mxu0
        %v787 = vpop.f32.mrb[0].mxu0
        %v788 = vadd.f32 %v524, %v787
        %v789 = vpop.f32.mrb[0].mxu0
        %790 = vmatprep.mubr.bf16.mxu0 0
        %791 = vmatmul.mubr.bf16.gmra.mrb[0].mxu0 %v492
        %v792 = vpop.f32.mrb[0].mxu0
        %v793 = vadd.f32 %v524, %v792
        %v794 = vpop.f32.mrb[0].mxu0
        %v795 = vpop.f32.mrb[0].mxu0
        %v796 = vadd.f32 %v524, %v795
        %v797 = vpop.f32.mrb[0].mxu0
        %798 = vmatprep.mubr.bf16.mxu0 0
        %799 = vmatmul.mubr.bf16.gmra.mrb[0].mxu0 %v493
        %v800 = vpop.f32.mrb[0].mxu0
        %v801 = vadd.f32 %v524, %v800
        %v802 = vpop.f32.mrb[0].mxu0
        %v803 = vpop.f32.mrb[0].mxu0
        %v804 = vadd.f32 %v524, %v803
        %v805 = vpop.f32.mrb[0].mxu0
        %806 = vmatprep.mubr.bf16.mxu0 0
        %807 = vmatmul.mubr.bf16.gmra.mrb[0].mxu0 %v494
        %v808 = vpop.f32.mrb[0].mxu0
        %v809 = vadd.f32 %v524, %v808
        %v810 = vpop.f32.mrb[0].mxu0
        %v811 = vpop.f32.mrb[0].mxu0
        %v812 = vadd.f32 %v524, %v811
        %v813 = vpop.f32.mrb[0].mxu0
        %814 = vmatprep.mubr.bf16.mxu0 0
        %815 = vmatmul.mubr.bf16.gmra.mrb[0].mxu0 %v495
        %v816 = vpop.f32.mrb[0].mxu0
        %v817 = vadd.f32 %v524, %v816
        %v818 = vpop.f32.mrb[0].mxu0
        %v819 = vpop.f32.mrb[0].mxu0
        %v820 = vadd.f32 %v524, %v819
        %v821 = vpop.f32.mrb[0].mxu0
        %822 = vmatprep.mubr.bf16.mxu0 0
        %823 = vmatmul.mubr.bf16.gmra.mrb[0].mxu0 %v496
        %v824 = vpop.f32.mrb[0].mxu0
        %v825 = vadd.f32 %v524, %v824
        %v826 = vpop.f32.mrb[0].mxu0
        %v827 = vpop.f32.mrb[0].mxu0
        %v828 = vadd.f32 %v524, %v827
        %v829 = vpop.f32.mrb[0].mxu0
        %830 = vmatprep.mubr.bf16.mxu0 0
        %831 = vmatmul.mubr.bf16.gmra.mrb[0].mxu0 %v497
        %v832 = vpop.f32.mrb[0].mxu0
        %v833 = vadd.f32 %v524, %v832
        %v834 = vpop.f32.mrb[0].mxu0
        %v835 = vpop.f32.mrb[0].mxu0
        %v836 = vadd.f32 %v524, %v835
        %v837 = vpop.f32.mrb[0].mxu0
        %838 = vmatprep.mubr.bf16.mxu0 0
        %839 = vmatmul.mubr.bf16.gmra.mrb[0].mxu0 %v498
        %v840 = vpop.f32.mrb[0].mxu0
        %v841 = vadd.f32 %v524, %v840
        %v842 = vpop.f32.mrb[0].mxu0
        %v843 = vpop.f32.mrb[0].mxu0
        %v844 = vadd.f32 %v524, %v843
        %v845 = vpop.f32.mrb[0].mxu0
        %846 = vmatprep.mubr.bf16.mxu0 0
        %847 = vmatmul.mubr.bf16.gmra.mrb[0].mxu0 %v499
        %v848 = vpop.f32.mrb[0].mxu0
        %v849 = vadd.f32 %v524, %v848
        %v850 = vpop.f32.mrb[0].mxu0
        %v851 = vpop.f32.mrb[0].mxu0
        %v852 = vadd.f32 %v524, %v851
        %v853 = vpop.f32.mrb[0].mxu0
        %854 = vmatprep.mubr.bf16.mxu0 0
        %855 = vmatmul.mubr.bf16.gmra.mrb[0].mxu0 %v500
        %v856 = vpop.f32.mrb[0].mxu0
        %v857 = vadd.f32 %v524, %v856
        %v858 = vpop.f32.mrb[0].mxu0
        %v859 = vpop.f32.mrb[0].mxu0
        %v860 = vadd.f32 %v524, %v859
        %v861 = vpop.f32.mrb[0].mxu0
        %862 = vdwg.mxu0
        %v863 = vtanh.pop %v609
        %v864 = vtanh.pop %v612
        %v865 = vtanh.pop %v617
        %v866 = vtanh.pop %v620
        %v867 = vtanh.pop %v625
        %v868 = vtanh.pop %v628
        %v869 = vtanh.pop %v633
        %v870 = vtanh.pop %v636
        %v871 = vtanh.pop %v641
        %v872 = vtanh.pop %v644
        %v873 = vtanh.pop %v649
        %v874 = vtanh.pop %v652
        %v875 = vtanh.pop %v657
        %v876 = vtanh.pop %v660
        %v877 = vtanh.pop %v665
        %v878 = vtanh.pop %v668
        %v879 = vtanh.pop %v673
        %v880 = vtanh.pop %v676
        %v881 = vtanh.pop %v681
        %v882 = vtanh.pop %v684
        %v883 = vtanh.pop %v689
        %v884 = vtanh.pop %v692
        %v885 = vtanh.pop %v697
        %v886 = vtanh.pop %v700
        %v887 = vtanh.pop %v705
        %v888 = vtanh.pop %v708
        %v889 = vtanh.pop %v713
        %v890 = vtanh.pop %v716
        %v891 = vtanh.pop %v721
        %v892 = vtanh.pop %v724
        %v893 = vtanh.pop %v729
        %v894 = vtanh.pop %v732
        %v895 = vtanh.pop %v737
        %v896 = vtanh.pop %v740
        %v897 = vtanh.pop %v745
        %v898 = vtanh.pop %v748
        %v899 = vtanh.pop %v753
        %v900 = vtanh.pop %v756
        %v901 = vtanh.pop %v761
        %v902 = vtanh.pop %v764
        %v903 = vtanh.pop %v769
        %v904 = vtanh.pop %v772
        %v905 = vtanh.pop %v777
        %v906 = vtanh.pop %v780
        %v907 = vtanh.pop %v785
        %v908 = vtanh.pop %v788
        %v909 = vtanh.pop %v793
        %v910 = vtanh.pop %v796
        %v911 = vtanh.pop %v801
        %v912 = vtanh.pop %v804
        %v913 = vtanh.pop %v809
        %v914 = vtanh.pop %v812
        %v915 = vtanh.pop %v817
        %v916 = vtanh.pop %v820
        %v917 = vtanh.pop %v825
        %v918 = vtanh.pop %v828
        %v919 = vtanh.pop %v833
        %v920 = vtanh.pop %v836
        %v921 = vtanh.pop %v841
        %v922 = vtanh.pop %v844
        %v923 = vtanh.pop %v849
        %v924 = vtanh.pop %v852
        %v925 = vtanh.pop %v857
        %v926 = vtanh.pop %v860
        %v927 = vpack.c.bf16 %v864, %v863
        %v928 = vpack.c.bf16 %v866, %v865
        %v929 = vpack.c.bf16 %v868, %v867
        %v930 = vpack.c.bf16 %v870, %v869
        %v931 = vpack.c.bf16 %v872, %v871
        %v932 = vpack.c.bf16 %v874, %v873
        %v933 = vpack.c.bf16 %v876, %v875
        %v934 = vpack.c.bf16 %v878, %v877
        %v935 = vpack.c.bf16 %v880, %v879
        %v936 = vpack.c.bf16 %v882, %v881
        %v937 = vpack.c.bf16 %v884, %v883
        %v938 = vpack.c.bf16 %v886, %v885
        %v939 = vpack.c.bf16 %v888, %v887
        %v940 = vpack.c.bf16 %v890, %v889
        %v941 = vpack.c.bf16 %v892, %v891
        %v942 = vpack.c.bf16 %v894, %v893
        %v943 = vpack.c.bf16 %v896, %v895
        %v944 = vpack.c.bf16 %v898, %v897
        %v945 = vpack.c.bf16 %v900, %v899
        %v946 = vpack.c.bf16 %v902, %v901
        %v947 = vpack.c.bf16 %v904, %v903
        %v948 = vpack.c.bf16 %v906, %v905
        %v949 = vpack.c.bf16 %v908, %v907
        %v950 = vpack.c.bf16 %v910, %v909
        %v951 = vpack.c.bf16 %v912, %v911
        %v952 = vpack.c.bf16 %v914, %v913
        %v953 = vpack.c.bf16 %v916, %v915
        %v954 = vpack.c.bf16 %v918, %v917
        %v955 = vpack.c.bf16 %v920, %v919
        %v956 = vpack.c.bf16 %v922, %v921
        %v957 = vpack.c.bf16 %v924, %v923
        %v958 = vpack.c.bf16 %v926, %v925
        %v959 = vld [vmem:[#allocation9] sm:$0xf]
        %v960 = vld [vmem:[#allocation9 + $0x4] sm:$0xf]
        %v961 = vld [vmem:[#allocation9 + $0x8] sm:$0xf]
        %v962 = vld [vmem:[#allocation9 + $0xc] sm:$0xf]
        %v963 = vld [vmem:[#allocation9 + $0x10] sm:$0xf]
        %v964 = vld [vmem:[#allocation9 + $0x14] sm:$0xf]
        %v965 = vld [vmem:[#allocation9 + $0x18] sm:$0xf]
        %v966 = vld [vmem:[#allocation9 + $0x1c] sm:$0xf]
        %v967 = vld [vmem:[#allocation9 + $0x20] sm:$0xf]
        %v968 = vld [vmem:[#allocation9 + $0x24] sm:$0xf]
        %v969 = vld [vmem:[#allocation9 + $0x28] sm:$0xf]
        %v970 = vld [vmem:[#allocation9 + $0x2c] sm:$0xf]
        %v971 = vld [vmem:[#allocation9 + $0x30] sm:$0xf]
        %v972 = vld [vmem:[#allocation9 + $0x34] sm:$0xf]
        %v973 = vld [vmem:[#allocation9 + $0x38] sm:$0xf]
        %v974 = vld [vmem:[#allocation9 + $0x3c] sm:$0xf]
        %v975 = vld [vmem:[%s5] sm:$0x1]
        %v977 = vlaneseq
        %v978 = vshrl.u32 %v977, 7
        %v979 = vsub.s32 0, %v978
        %v980 = vrot.slane %v975, %v979
        %v998 = vunpack.c.l.b16 %v959
        %v999 = vunpack.c.l.b16 %v960
        %v1000 = vunpack.c.l.b16 %v961
        %v1001 = vunpack.c.l.b16 %v962
        %v1002 = vunpack.c.l.b16 %v963
        %v1003 = vunpack.c.l.b16 %v964
        %v1004 = vunpack.c.l.b16 %v965
        %v1005 = vunpack.c.l.b16 %v966
        %v1006 = vunpack.c.l.b16 %v967
        %v1007 = vunpack.c.l.b16 %v968
        %v1008 = vunpack.c.l.b16 %v969
        %v1009 = vunpack.c.l.b16 %v970
        %v1010 = vunpack.c.l.b16 %v971
        %v1011 = vunpack.c.l.b16 %v972
        %v1012 = vunpack.c.l.b16 %v973
        %v1013 = vunpack.c.l.b16 %v974
        %v1014 = vpack.c.b16 %v999, %v998
        %v1015 = vpack.c.b16 %v1001, %v1000
        %v1016 = vpack.c.b16 %v1003, %v1002
        %v1017 = vpack.c.b16 %v1005, %v1004
        %v1018 = vpack.c.b16 %v1007, %v1006
        %v1019 = vpack.c.b16 %v1009, %v1008
        %v1020 = vpack.c.b16 %v1011, %v1010
        %v1021 = vpack.c.b16 %v1013, %v1012
        %1030 = vmatprep.subr.bf16.mxu0 0
        %1031 = vmatpush1.bf16.msra.mxu0 %v1014
        %1032 = vmatprep.subr.bf16.mxu0 0
        %1033 = vmatpush1.bf16.msra.mxu0 %v1015
        %1034 = vmatprep.subr.bf16.mxu0 0
        %1035 = vmatpush1.bf16.msra.mxu0 %v1016
        %1036 = vmatprep.subr.bf16.mxu0 0
        %1037 = vmatpush1.bf16.msra.mxu0 %v1017
        %1038 = vmatprep.subr.bf16.mxu0 0
        %1039 = vmatpush1.bf16.msra.mxu0 %v1018
        %1040 = vmatprep.subr.bf16.mxu0 0
        %1041 = vmatpush1.bf16.msra.mxu0 %v1019
        %1042 = vmatprep.subr.bf16.mxu0 0
        %1043 = vmatpush1.bf16.msra.mxu0 %v1020
        %1044 = vmatprep.subr.bf16.mxu0 0
        %1045 = vmatpush1.bf16.msra.mxu0 %v1021
        %1046 = vmatprep.subr.bf16.mxu0 0
        %1047 = vmatpush1.bf16.msra.mxu0 0
        %1048 = vmatprep.subr.bf16.mxu0 0
        %1049 = vmatpush1.bf16.msra.mxu0 0
        %1050 = vmatprep.subr.bf16.mxu0 0
        %1051 = vmatpush1.bf16.msra.mxu0 0
        %1052 = vmatprep.subr.bf16.mxu0 0
        %1053 = vmatpush1.bf16.msra.mxu0 0
        %1054 = vmatprep.subr.bf16.mxu0 0
        %1055 = vmatpush1.bf16.msra.mxu0 0
        %1056 = vmatprep.subr.bf16.mxu0 0
        %1057 = vmatpush1.bf16.msra.mxu0 0
        %1058 = vmatprep.subr.bf16.mxu0 0
        %1059 = vmatpush1.bf16.msra.mxu0 0
        %1060 = vmatprep.subr.bf16.mxu0 0
        %1061 = vmatpush1.bf16.msra.mxu0 0
        %1062 = vmatprep.mubr.bf16.mxu0 0
        %1063 = vmatmul.mubr.bf16.gmra.mrb[0].mxu0 %v927
        %v1064 = vpop.f32.mrb[0].mxu0
        %v1065 = vadd.f32 %v980, %v1064
        %v1066 = vpop.f32.mrb[0].mxu0
        %v1067 = vpop.f32.mrb[0].mxu0
        %v1068 = vadd.f32 %v980, %v1067
        %v1069 = vpop.f32.mrb[0].mxu0
        %1070 = vmatprep.mubr.bf16.mxu0 0
        %1071 = vmatmul.mubr.bf16.gmra.mrb[0].mxu0 %v928
        %v1072 = vpop.f32.mrb[0].mxu0
        %v1073 = vadd.f32 %v980, %v1072
        %v1074 = vpop.f32.mrb[0].mxu0
        %v1075 = vpop.f32.mrb[0].mxu0
        %v1076 = vadd.f32 %v980, %v1075
        %v1077 = vpop.f32.mrb[0].mxu0
        %1078 = vmatprep.mubr.bf16.mxu0 0
        %1079 = vmatmul.mubr.bf16.gmra.mrb[0].mxu0 %v929
        %v1080 = vpop.f32.mrb[0].mxu0
        %v1081 = vadd.f32 %v980, %v1080
        %v1082 = vpop.f32.mrb[0].mxu0
        %v1083 = vpop.f32.mrb[0].mxu0
        %v1084 = vadd.f32 %v980, %v1083
        %v1085 = vpop.f32.mrb[0].mxu0
        %1086 = vmatprep.mubr.bf16.mxu0 0
        %1087 = vmatmul.mubr.bf16.gmra.mrb[0].mxu0 %v930
        %v1088 = vpop.f32.mrb[0].mxu0
        %v1089 = vadd.f32 %v980, %v1088
        %v1090 = vpop.f32.mrb[0].mxu0
        %v1091 = vpop.f32.mrb[0].mxu0
        %v1092 = vadd.f32 %v980, %v1091
        %v1093 = vpop.f32.mrb[0].mxu0
        %1094 = vmatprep.mubr.bf16.mxu0 0
        %1095 = vmatmul.mubr.bf16.gmra.mrb[0].mxu0 %v931
        %v1096 = vpop.f32.mrb[0].mxu0
        %v1097 = vadd.f32 %v980, %v1096
        %v1098 = vpop.f32.mrb[0].mxu0
        %v1099 = vpop.f32.mrb[0].mxu0
        %v1100 = vadd.f32 %v980, %v1099
        %v1101 = vpop.f32.mrb[0].mxu0
        %1102 = vmatprep.mubr.bf16.mxu0 0
        %1103 = vmatmul.mubr.bf16.gmra.mrb[0].mxu0 %v932
        %v1104 = vpop.f32.mrb[0].mxu0
        %v1105 = vadd.f32 %v980, %v1104
        %v1106 = vpop.f32.mrb[0].mxu0
        %v1107 = vpop.f32.mrb[0].mxu0
        %v1108 = vadd.f32 %v980, %v1107
        %v1109 = vpop.f32.mrb[0].mxu0
        %1110 = vmatprep.mubr.bf16.mxu0 0
        %1111 = vmatmul.mubr.bf16.gmra.mrb[0].mxu0 %v933
        %v1112 = vpop.f32.mrb[0].mxu0
        %v1113 = vadd.f32 %v980, %v1112
        %v1114 = vpop.f32.mrb[0].mxu0
        %v1115 = vpop.f32.mrb[0].mxu0
        %v1116 = vadd.f32 %v980, %v1115
        %v1117 = vpop.f32.mrb[0].mxu0
        %1118 = vmatprep.mubr.bf16.mxu0 0
        %1119 = vmatmul.mubr.bf16.gmra.mrb[0].mxu0 %v934
        %v1120 = vpop.f32.mrb[0].mxu0
        %v1121 = vadd.f32 %v980, %v1120
        %v1122 = vpop.f32.mrb[0].mxu0
        %v1123 = vpop.f32.mrb[0].mxu0
        %v1124 = vadd.f32 %v980, %v1123
        %v1125 = vpop.f32.mrb[0].mxu0
        %1126 = vmatprep.mubr.bf16.mxu0 0
        %1127 = vmatmul.mubr.bf16.gmra.mrb[0].mxu0 %v935
        %v1128 = vpop.f32.mrb[0].mxu0
        %v1129 = vadd.f32 %v980, %v1128
        %v1130 = vpop.f32.mrb[0].mxu0
        %v1131 = vpop.f32.mrb[0].mxu0
        %v1132 = vadd.f32 %v980, %v1131
        %v1133 = vpop.f32.mrb[0].mxu0
        %1134 = vmatprep.mubr.bf16.mxu0 0
        %1135 = vmatmul.mubr.bf16.gmra.mrb[0].mxu0 %v936
        %v1136 = vpop.f32.mrb[0].mxu0
        %v1137 = vadd.f32 %v980, %v1136
        %v1138 = vpop.f32.mrb[0].mxu0
        %v1139 = vpop.f32.mrb[0].mxu0
        %v1140 = vadd.f32 %v980, %v1139
        %v1141 = vpop.f32.mrb[0].mxu0
        %1142 = vmatprep.mubr.bf16.mxu0 0
        %1143 = vmatmul.mubr.bf16.gmra.mrb[0].mxu0 %v937
        %v1144 = vpop.f32.mrb[0].mxu0
        %v1145 = vadd.f32 %v980, %v1144
        %v1146 = vpop.f32.mrb[0].mxu0
        %v1147 = vpop.f32.mrb[0].mxu0
        %v1148 = vadd.f32 %v980, %v1147
        %v1149 = vpop.f32.mrb[0].mxu0
        %1150 = vmatprep.mubr.bf16.mxu0 0
        %1151 = vmatmul.mubr.bf16.gmra.mrb[0].mxu0 %v938
        %v1152 = vpop.f32.mrb[0].mxu0
        %v1153 = vadd.f32 %v980, %v1152
        %v1154 = vpop.f32.mrb[0].mxu0
        %v1155 = vpop.f32.mrb[0].mxu0
        %v1156 = vadd.f32 %v980, %v1155
        %v1157 = vpop.f32.mrb[0].mxu0
        %1158 = vmatprep.mubr.bf16.mxu0 0
        %1159 = vmatmul.mubr.bf16.gmra.mrb[0].mxu0 %v939
        %v1160 = vpop.f32.mrb[0].mxu0
        %v1161 = vadd.f32 %v980, %v1160
        %v1162 = vpop.f32.mrb[0].mxu0
        %v1163 = vpop.f32.mrb[0].mxu0
        %v1164 = vadd.f32 %v980, %v1163
        %v1165 = vpop.f32.mrb[0].mxu0
        %1166 = vmatprep.mubr.bf16.mxu0 0
        %1167 = vmatmul.mubr.bf16.gmra.mrb[0].mxu0 %v940
        %v1168 = vpop.f32.mrb[0].mxu0
        %v1169 = vadd.f32 %v980, %v1168
        %v1170 = vpop.f32.mrb[0].mxu0
        %v1171 = vpop.f32.mrb[0].mxu0
        %v1172 = vadd.f32 %v980, %v1171
        %v1173 = vpop.f32.mrb[0].mxu0
        %1174 = vmatprep.mubr.bf16.mxu0 0
        %1175 = vmatmul.mubr.bf16.gmra.mrb[0].mxu0 %v941
        %v1176 = vpop.f32.mrb[0].mxu0
        %v1177 = vadd.f32 %v980, %v1176
        %v1178 = vpop.f32.mrb[0].mxu0
        %v1179 = vpop.f32.mrb[0].mxu0
        %v1180 = vadd.f32 %v980, %v1179
        %v1181 = vpop.f32.mrb[0].mxu0
        %1182 = vmatprep.mubr.bf16.mxu0 0
        %1183 = vmatmul.mubr.bf16.gmra.mrb[0].mxu0 %v942
        %v1184 = vpop.f32.mrb[0].mxu0
        %v1185 = vadd.f32 %v980, %v1184
        %v1186 = vpop.f32.mrb[0].mxu0
        %v1187 = vpop.f32.mrb[0].mxu0
        %v1188 = vadd.f32 %v980, %v1187
        %v1189 = vpop.f32.mrb[0].mxu0
        %1190 = vmatprep.mubr.bf16.mxu0 0
        %1191 = vmatmul.mubr.bf16.gmra.mrb[0].mxu0 %v943
        %v1192 = vpop.f32.mrb[0].mxu0
        %v1193 = vadd.f32 %v980, %v1192
        %v1194 = vpop.f32.mrb[0].mxu0
        %v1195 = vpop.f32.mrb[0].mxu0
        %v1196 = vadd.f32 %v980, %v1195
        %v1197 = vpop.f32.mrb[0].mxu0
        %1198 = vmatprep.mubr.bf16.mxu0 0
        %1199 = vmatmul.mubr.bf16.gmra.mrb[0].mxu0 %v944
        %v1200 = vpop.f32.mrb[0].mxu0
        %v1201 = vadd.f32 %v980, %v1200
        %v1202 = vpop.f32.mrb[0].mxu0
        %v1203 = vpop.f32.mrb[0].mxu0
        %v1204 = vadd.f32 %v980, %v1203
        %v1205 = vpop.f32.mrb[0].mxu0
        %1206 = vmatprep.mubr.bf16.mxu0 0
        %1207 = vmatmul.mubr.bf16.gmra.mrb[0].mxu0 %v945
        %v1208 = vpop.f32.mrb[0].mxu0
        %v1209 = vadd.f32 %v980, %v1208
        %v1210 = vpop.f32.mrb[0].mxu0
        %v1211 = vpop.f32.mrb[0].mxu0
        %v1212 = vadd.f32 %v980, %v1211
        %v1213 = vpop.f32.mrb[0].mxu0
        %1214 = vmatprep.mubr.bf16.mxu0 0
        %1215 = vmatmul.mubr.bf16.gmra.mrb[0].mxu0 %v946
        %v1216 = vpop.f32.mrb[0].mxu0
        %v1217 = vadd.f32 %v980, %v1216
        %v1218 = vpop.f32.mrb[0].mxu0
        %v1219 = vpop.f32.mrb[0].mxu0
        %v1220 = vadd.f32 %v980, %v1219
        %v1221 = vpop.f32.mrb[0].mxu0
        %1222 = vmatprep.mubr.bf16.mxu0 0
        %1223 = vmatmul.mubr.bf16.gmra.mrb[0].mxu0 %v947
        %v1224 = vpop.f32.mrb[0].mxu0
        %v1225 = vadd.f32 %v980, %v1224
        %v1226 = vpop.f32.mrb[0].mxu0
        %v1227 = vpop.f32.mrb[0].mxu0
        %v1228 = vadd.f32 %v980, %v1227
        %v1229 = vpop.f32.mrb[0].mxu0
        %1230 = vmatprep.mubr.bf16.mxu0 0
        %1231 = vmatmul.mubr.bf16.gmra.mrb[0].mxu0 %v948
        %v1232 = vpop.f32.mrb[0].mxu0
        %v1233 = vadd.f32 %v980, %v1232
        %v1234 = vpop.f32.mrb[0].mxu0
        %v1235 = vpop.f32.mrb[0].mxu0
        %v1236 = vadd.f32 %v980, %v1235
        %v1237 = vpop.f32.mrb[0].mxu0
        %1238 = vmatprep.mubr.bf16.mxu0 0
        %1239 = vmatmul.mubr.bf16.gmra.mrb[0].mxu0 %v949
        %v1240 = vpop.f32.mrb[0].mxu0
        %v1241 = vadd.f32 %v980, %v1240
        %v1242 = vpop.f32.mrb[0].mxu0
        %v1243 = vpop.f32.mrb[0].mxu0
        %v1244 = vadd.f32 %v980, %v1243
        %v1245 = vpop.f32.mrb[0].mxu0
        %1246 = vmatprep.mubr.bf16.mxu0 0
        %1247 = vmatmul.mubr.bf16.gmra.mrb[0].mxu0 %v950
        %v1248 = vpop.f32.mrb[0].mxu0
        %v1249 = vadd.f32 %v980, %v1248
        %v1250 = vpop.f32.mrb[0].mxu0
        %v1251 = vpop.f32.mrb[0].mxu0
        %v1252 = vadd.f32 %v980, %v1251
        %v1253 = vpop.f32.mrb[0].mxu0
        %1254 = vmatprep.mubr.bf16.mxu0 0
        %1255 = vmatmul.mubr.bf16.gmra.mrb[0].mxu0 %v951
        %v1256 = vpop.f32.mrb[0].mxu0
        %v1257 = vadd.f32 %v980, %v1256
        %v1258 = vpop.f32.mrb[0].mxu0
        %v1259 = vpop.f32.mrb[0].mxu0
        %v1260 = vadd.f32 %v980, %v1259
        %v1261 = vpop.f32.mrb[0].mxu0
        %1262 = vmatprep.mubr.bf16.mxu0 0
        %1263 = vmatmul.mubr.bf16.gmra.mrb[0].mxu0 %v952
        %v1264 = vpop.f32.mrb[0].mxu0
        %v1265 = vadd.f32 %v980, %v1264
        %v1266 = vpop.f32.mrb[0].mxu0
        %v1267 = vpop.f32.mrb[0].mxu0
        %v1268 = vadd.f32 %v980, %v1267
        %v1269 = vpop.f32.mrb[0].mxu0
        %1270 = vmatprep.mubr.bf16.mxu0 0
        %1271 = vmatmul.mubr.bf16.gmra.mrb[0].mxu0 %v953
        %v1272 = vpop.f32.mrb[0].mxu0
        %v1273 = vadd.f32 %v980, %v1272
        %v1274 = vpop.f32.mrb[0].mxu0
        %v1275 = vpop.f32.mrb[0].mxu0
        %v1276 = vadd.f32 %v980, %v1275
        %v1277 = vpop.f32.mrb[0].mxu0
        %1278 = vmatprep.mubr.bf16.mxu0 0
        %1279 = vmatmul.mubr.bf16.gmra.mrb[0].mxu0 %v954
        %v1280 = vpop.f32.mrb[0].mxu0
        %v1281 = vadd.f32 %v980, %v1280
        %v1282 = vpop.f32.mrb[0].mxu0
        %v1283 = vpop.f32.mrb[0].mxu0
        %v1284 = vadd.f32 %v980, %v1283
        %v1285 = vpop.f32.mrb[0].mxu0
        %1286 = vmatprep.mubr.bf16.mxu0 0
        %1287 = vmatmul.mubr.bf16.gmra.mrb[0].mxu0 %v955
        %v1288 = vpop.f32.mrb[0].mxu0
        %v1289 = vadd.f32 %v980, %v1288
        %v1290 = vpop.f32.mrb[0].mxu0
        %v1291 = vpop.f32.mrb[0].mxu0
        %v1292 = vadd.f32 %v980, %v1291
        %v1293 = vpop.f32.mrb[0].mxu0
        %1294 = vmatprep.mubr.bf16.mxu0 0
        %1295 = vmatmul.mubr.bf16.gmra.mrb[0].mxu0 %v956
        %v1296 = vpop.f32.mrb[0].mxu0
        %v1297 = vadd.f32 %v980, %v1296
        %v1298 = vpop.f32.mrb[0].mxu0
        %v1299 = vpop.f32.mrb[0].mxu0
        %v1300 = vadd.f32 %v980, %v1299
        %v1301 = vpop.f32.mrb[0].mxu0
        %1302 = vmatprep.mubr.bf16.mxu0 0
        %1303 = vmatmul.mubr.bf16.gmra.mrb[0].mxu0 %v957
        %v1304 = vpop.f32.mrb[0].mxu0
        %v1305 = vadd.f32 %v980, %v1304
        %v1306 = vpop.f32.mrb[0].mxu0
        %v1307 = vpop.f32.mrb[0].mxu0
        %v1308 = vadd.f32 %v980, %v1307
        %v1309 = vpop.f32.mrb[0].mxu0
        %1310 = vmatprep.mubr.bf16.mxu0 0
        %1311 = vmatmul.mubr.bf16.gmra.mrb[0].mxu0 %v958
        %v1312 = vpop.f32.mrb[0].mxu0
        %v1313 = vadd.f32 %v980, %v1312
        %v1314 = vpop.f32.mrb[0].mxu0
        %v1315 = vpop.f32.mrb[0].mxu0
        %v1316 = vadd.f32 %v980, %v1315
        %v1317 = vpop.f32.mrb[0].mxu0
        %1318 = vdwg.mxu0
        %v1319 = vstv %s335
        %v1320 = vmul.f32 %v1319, %v340
        %v1321 = vmul.f32 %v1319, %v341
        %v1322 = vmul.f32 %v1319, %v342
        %v1323 = vmul.f32 %v1319, %v343
        %v1324 = vmul.f32 %v1319, %v344
        %v1325 = vmul.f32 %v1319, %v345
        %v1326 = vmul.f32 %v1319, %v346
        %v1327 = vmul.f32 %v1319, %v347
        %v1328 = vmul.f32 %v1319, %v348
        %v1329 = vmul.f32 %v1319, %v349
        %v1330 = vmul.f32 %v1319, %v350
        %v1331 = vmul.f32 %v1319, %v351
        %v1332 = vmul.f32 %v1319, %v352
        %v1333 = vmul.f32 %v1319, %v353
        %v1334 = vmul.f32 %v1319, %v354
        %v1335 = vmul.f32 %v1319, %v355
        %v1336 = vmul.f32 %v1319, %v356
        %v1337 = vmul.f32 %v1319, %v357
        %v1338 = vmul.f32 %v1319, %v358
        %v1339 = vmul.f32 %v1319, %v359
        %v1340 = vmul.f32 %v1319, %v360
        %v1341 = vmul.f32 %v1319, %v361
        %v1342 = vmul.f32 %v1319, %v362
        %v1343 = vmul.f32 %v1319, %v363
        %v1344 = vmul.f32 %v1319, %v364
        %v1345 = vmul.f32 %v1319, %v365
        %v1346 = vmul.f32 %v1319, %v366
        %v1347 = vmul.f32 %v1319, %v367
        %v1348 = vmul.f32 %v1319, %v368
        %v1349 = vmul.f32 %v1319, %v369
        %v1350 = vmul.f32 %v1319, %v370
        %v1351 = vmul.f32 %v1319, %v371
        %v1352 = vmul.f32 %v1319, %v372
        %v1353 = vmul.f32 %v1319, %v373
        %v1354 = vmul.f32 %v1319, %v374
        %v1355 = vmul.f32 %v1319, %v375
        %v1356 = vmul.f32 %v1319, %v376
        %v1357 = vmul.f32 %v1319, %v377
        %v1358 = vmul.f32 %v1319, %v378
        %v1359 = vmul.f32 %v1319, %v379
        %v1360 = vmul.f32 %v1319, %v380
        %v1361 = vmul.f32 %v1319, %v381
        %v1362 = vmul.f32 %v1319, %v382
        %v1363 = vmul.f32 %v1319, %v383
        %v1364 = vmul.f32 %v1319, %v384
        %v1365 = vmul.f32 %v1319, %v385
        %v1366 = vmul.f32 %v1319, %v386
        %v1367 = vmul.f32 %v1319, %v387
        %v1368 = vmul.f32 %v1319, %v388
        %v1369 = vmul.f32 %v1319, %v389
        %v1370 = vmul.f32 %v1319, %v390
        %v1371 = vmul.f32 %v1319, %v391
        %v1372 = vmul.f32 %v1319, %v392
        %v1373 = vmul.f32 %v1319, %v393
        %v1374 = vmul.f32 %v1319, %v394
        %v1375 = vmul.f32 %v1319, %v395
        %v1376 = vmul.f32 %v1319, %v396
        %v1377 = vmul.f32 %v1319, %v397
        %v1378 = vmul.f32 %v1319, %v398
        %v1379 = vmul.f32 %v1319, %v399
        %v1380 = vmul.f32 %v1319, %v400
        %v1381 = vmul.f32 %v1319, %v401
        %v1382 = vmul.f32 %v1319, %v402
        %v1383 = vmul.f32 %v1319, %v403
        %v1384 = vstv %s337
        %v1385 = vmul.f32 %v1384, %v1065
        %v1386 = vmul.f32 %v1384, %v1068
        %v1387 = vmul.f32 %v1384, %v1073
        %v1388 = vmul.f32 %v1384, %v1076
        %v1389 = vmul.f32 %v1384, %v1081
        %v1390 = vmul.f32 %v1384, %v1084
        %v1391 = vmul.f32 %v1384, %v1089
        %v1392 = vmul.f32 %v1384, %v1092
        %v1393 = vmul.f32 %v1384, %v1097
        %v1394 = vmul.f32 %v1384, %v1100
        %v1395 = vmul.f32 %v1384, %v1105
        %v1396 = vmul.f32 %v1384, %v1108
        %v1397 = vmul.f32 %v1384, %v1113
        %v1398 = vmul.f32 %v1384, %v1116
        %v1399 = vmul.f32 %v1384, %v1121
        %v1400 = vmul.f32 %v1384, %v1124
        %v1401 = vmul.f32 %v1384, %v1129
        %v1402 = vmul.f32 %v1384, %v1132
        %v1403 = vmul.f32 %v1384, %v1137
        %v1404 = vmul.f32 %v1384, %v1140
        %v1405 = vmul.f32 %v1384, %v1145
        %v1406 = vmul.f32 %v1384, %v1148
        %v1407 = vmul.f32 %v1384, %v1153
        %v1408 = vmul.f32 %v1384, %v1156
        %v1409 = vmul.f32 %v1384, %v1161
        %v1410 = vmul.f32 %v1384, %v1164
        %v1411 = vmul.f32 %v1384, %v1169
        %v1412 = vmul.f32 %v1384, %v1172
        %v1413 = vmul.f32 %v1384, %v1177
        %v1414 = vmul.f32 %v1384, %v1180
        %v1415 = vmul.f32 %v1384, %v1185
        %v1416 = vmul.f32 %v1384, %v1188
        %v1417 = vmul.f32 %v1384, %v1193
        %v1418 = vmul.f32 %v1384, %v1196
        %v1419 = vmul.f32 %v1384, %v1201
        %v1420 = vmul.f32 %v1384, %v1204
        %v1421 = vmul.f32 %v1384, %v1209
        %v1422 = vmul.f32 %v1384, %v1212
        %v1423 = vmul.f32 %v1384, %v1217
        %v1424 = vmul.f32 %v1384, %v1220
        %v1425 = vmul.f32 %v1384, %v1225
        %v1426 = vmul.f32 %v1384, %v1228
        %v1427 = vmul.f32 %v1384, %v1233
        %v1428 = vmul.f32 %v1384, %v1236
        %v1429 = vmul.f32 %v1384, %v1241
        %v1430 = vmul.f32 %v1384, %v1244
        %v1431 = vmul.f32 %v1384, %v1249
        %v1432 = vmul.f32 %v1384, %v1252
        %v1433 = vmul.f32 %v1384, %v1257
        %v1434 = vmul.f32 %v1384, %v1260
        %v1435 = vmul.f32 %v1384, %v1265
        %v1436 = vmul.f32 %v1384, %v1268
        %v1437 = vmul.f32 %v1384, %v1273
        %v1438 = vmul.f32 %v1384, %v1276
        %v1439 = vmul.f32 %v1384, %v1281
        %v1440 = vmul.f32 %v1384, %v1284
        %v1441 = vmul.f32 %v1384, %v1289
        %v1442 = vmul.f32 %v1384, %v1292
        %v1443 = vmul.f32 %v1384, %v1297
        %v1444 = vmul.f32 %v1384, %v1300
        %v1445 = vmul.f32 %v1384, %v1305
        %v1446 = vmul.f32 %v1384, %v1308
        %v1447 = vmul.f32 %v1384, %v1313
        %v1448 = vmul.f32 %v1384, %v1316
        %v1449 = vadd.f32 %v1320, %v1385
        %v1450 = vadd.f32 %v1321, %v1386
        %v1451 = vadd.f32 %v1322, %v1387
        %v1452 = vadd.f32 %v1323, %v1388
        %v1453 = vadd.f32 %v1324, %v1389
        %v1454 = vadd.f32 %v1325, %v1390
        %v1455 = vadd.f32 %v1326, %v1391
        %v1456 = vadd.f32 %v1327, %v1392
        %v1457 = vadd.f32 %v1328, %v1393
        %v1458 = vadd.f32 %v1329, %v1394
        %v1459 = vadd.f32 %v1330, %v1395
        %v1460 = vadd.f32 %v1331, %v1396
        %v1461 = vadd.f32 %v1332, %v1397
        %v1462 = vadd.f32 %v1333, %v1398
        %v1463 = vadd.f32 %v1334, %v1399
        %v1464 = vadd.f32 %v1335, %v1400
        %v1465 = vadd.f32 %v1336, %v1401
        %v1466 = vadd.f32 %v1337, %v1402
        %v1467 = vadd.f32 %v1338, %v1403
        %v1468 = vadd.f32 %v1339, %v1404
        %v1469 = vadd.f32 %v1340, %v1405
        %v1470 = vadd.f32 %v1341, %v1406
        %v1471 = vadd.f32 %v1342, %v1407
        %v1472 = vadd.f32 %v1343, %v1408
        %v1473 = vadd.f32 %v1344, %v1409
        %v1474 = vadd.f32 %v1345, %v1410
        %v1475 = vadd.f32 %v1346, %v1411
        %v1476 = vadd.f32 %v1347, %v1412
        %v1477 = vadd.f32 %v1348, %v1413
        %v1478 = vadd.f32 %v1349, %v1414
        %v1479 = vadd.f32 %v1350, %v1415
        %v1480 = vadd.f32 %v1351, %v1416
        %v1481 = vadd.f32 %v1352, %v1417
        %v1482 = vadd.f32 %v1353, %v1418
        %v1483 = vadd.f32 %v1354, %v1419
        %v1484 = vadd.f32 %v1355, %v1420
        %v1485 = vadd.f32 %v1356, %v1421
        %v1486 = vadd.f32 %v1357, %v1422
        %v1487 = vadd.f32 %v1358, %v1423
        %v1488 = vadd.f32 %v1359, %v1424
        %v1489 = vadd.f32 %v1360, %v1425
        %v1490 = vadd.f32 %v1361, %v1426
        %v1491 = vadd.f32 %v1362, %v1427
        %v1492 = vadd.f32 %v1363, %v1428
        %v1493 = vadd.f32 %v1364, %v1429
        %v1494 = vadd.f32 %v1365, %v1430
        %v1495 = vadd.f32 %v1366, %v1431
        %v1496 = vadd.f32 %v1367, %v1432
        %v1497 = vadd.f32 %v1368, %v1433
        %v1498 = vadd.f32 %v1369, %v1434
        %v1499 = vadd.f32 %v1370, %v1435
        %v1500 = vadd.f32 %v1371, %v1436
        %v1501 = vadd.f32 %v1372, %v1437
        %v1502 = vadd.f32 %v1373, %v1438
        %v1503 = vadd.f32 %v1374, %v1439
        %v1504 = vadd.f32 %v1375, %v1440
        %v1505 = vadd.f32 %v1376, %v1441
        %v1506 = vadd.f32 %v1377, %v1442
        %v1507 = vadd.f32 %v1378, %v1443
        %v1508 = vadd.f32 %v1379, %v1444
        %v1509 = vadd.f32 %v1380, %v1445
        %v1510 = vadd.f32 %v1381, %v1446
        %v1511 = vadd.f32 %v1382, %v1447
        %v1512 = vadd.f32 %v1383, %v1448
        %1513 = vst [vmem:[%s328] sm:$0xff] %v1449
        %1514 = vst [vmem:[%s328 + $0x8] sm:$0xff] %v1450
        %1515 = vst [vmem:[%s328 + $0x10] sm:$0xff] %v1451
        %1516 = vst [vmem:[%s328 + $0x18] sm:$0xff] %v1452
        %1517 = vst [vmem:[%s328 + $0x20] sm:$0xff] %v1453
        %1518 = vst [vmem:[%s328 + $0x28] sm:$0xff] %v1454
        %1519 = vst [vmem:[%s328 + $0x30] sm:$0xff] %v1455
        %1520 = vst [vmem:[%s328 + $0x38] sm:$0xff] %v1456
        %1521 = vst [vmem:[%s328 + $0x40] sm:$0xff] %v1457
        %1522 = vst [vmem:[%s328 + $0x48] sm:$0xff] %v1458
        %1523 = vst [vmem:[%s328 + $0x50] sm:$0xff] %v1459
        %1524 = vst [vmem:[%s328 + $0x58] sm:$0xff] %v1460
        %1525 = vst [vmem:[%s328 + $0x60] sm:$0xff] %v1461
        %1526 = vst [vmem:[%s328 + $0x68] sm:$0xff] %v1462
        %1527 = vst [vmem:[%s328 + $0x70] sm:$0xff] %v1463
        %1528 = vst [vmem:[%s328 + $0x78] sm:$0xff] %v1464
        %1529 = vst [vmem:[%s328 + $0x80] sm:$0xff] %v1465
        %1530 = vst [vmem:[%s328 + $0x88] sm:$0xff] %v1466
        %1531 = vst [vmem:[%s328 + $0x90] sm:$0xff] %v1467
        %1532 = vst [vmem:[%s328 + $0x98] sm:$0xff] %v1468
        %1533 = vst [vmem:[%s328 + $0xa0] sm:$0xff] %v1469
        %1534 = vst [vmem:[%s328 + $0xa8] sm:$0xff] %v1470
        %1535 = vst [vmem:[%s328 + $0xb0] sm:$0xff] %v1471
        %1536 = vst [vmem:[%s328 + $0xb8] sm:$0xff] %v1472
        %1537 = vst [vmem:[%s328 + $0xc0] sm:$0xff] %v1473
        %1538 = vst [vmem:[%s328 + $0xc8] sm:$0xff] %v1474
        %1539 = vst [vmem:[%s328 + $0xd0] sm:$0xff] %v1475
        %1540 = vst [vmem:[%s328 + $0xd8] sm:$0xff] %v1476
        %1541 = vst [vmem:[%s328 + $0xe0] sm:$0xff] %v1477
        %1542 = vst [vmem:[%s328 + $0xe8] sm:$0xff] %v1478
        %1543 = vst [vmem:[%s328 + $0xf0] sm:$0xff] %v1479
        %1544 = vst [vmem:[%s328 + $0xf8] sm:$0xff] %v1480
        %1545 = vst [vmem:[%s328 + $0x100] sm:$0xff] %v1481
        %1546 = vst [vmem:[%s328 + $0x108] sm:$0xff] %v1482
        %1547 = vst [vmem:[%s328 + $0x110] sm:$0xff] %v1483
        %1548 = vst [vmem:[%s328 + $0x118] sm:$0xff] %v1484
        %1549 = vst [vmem:[%s328 + $0x120] sm:$0xff] %v1485
        %1550 = vst [vmem:[%s328 + $0x128] sm:$0xff] %v1486
        %1551 = vst [vmem:[%s328 + $0x130] sm:$0xff] %v1487
        %1552 = vst [vmem:[%s328 + $0x138] sm:$0xff] %v1488
        %1553 = vst [vmem:[%s328 + $0x140] sm:$0xff] %v1489
        %1554 = vst [vmem:[%s328 + $0x148] sm:$0xff] %v1490
        %1555 = vst [vmem:[%s328 + $0x150] sm:$0xff] %v1491
        %1556 = vst [vmem:[%s328 + $0x158] sm:$0xff] %v1492
        %1557 = vst [vmem:[%s328 + $0x160] sm:$0xff] %v1493
        %1558 = vst [vmem:[%s328 + $0x168] sm:$0xff] %v1494
        %1559 = vst [vmem:[%s328 + $0x170] sm:$0xff] %v1495
        %1560 = vst [vmem:[%s328 + $0x178] sm:$0xff] %v1496
        %1561 = vst [vmem:[%s328 + $0x180] sm:$0xff] %v1497
        %1562 = vst [vmem:[%s328 + $0x188] sm:$0xff] %v1498
        %1563 = vst [vmem:[%s328 + $0x190] sm:$0xff] %v1499
        %1564 = vst [vmem:[%s328 + $0x198] sm:$0xff] %v1500
        %1565 = vst [vmem:[%s328 + $0x1a0] sm:$0xff] %v1501
        %1566 = vst [vmem:[%s328 + $0x1a8] sm:$0xff] %v1502
        %1567 = vst [vmem:[%s328 + $0x1b0] sm:$0xff] %v1503
        %1568 = vst [vmem:[%s328 + $0x1b8] sm:$0xff] %v1504
        %1569 = vst [vmem:[%s328 + $0x1c0] sm:$0xff] %v1505
        %1570 = vst [vmem:[%s328 + $0x1c8] sm:$0xff] %v1506
        %1571 = vst [vmem:[%s328 + $0x1d0] sm:$0xff] %v1507
        %1572 = vst [vmem:[%s328 + $0x1d8] sm:$0xff] %v1508
        %1573 = vst [vmem:[%s328 + $0x1e0] sm:$0xff] %v1509
        %1574 = vst [vmem:[%s328 + $0x1e8] sm:$0xff] %v1510
        %1575 = vst [vmem:[%s328 + $0x1f0] sm:$0xff] %v1511
        %1576 = vst [vmem:[%s328 + $0x1f8] sm:$0xff] %v1512
        %s1577 = sand.u32 %s180, 1
        %s1578 = scalar_lea.sflag [#allocation4], %s1577
        %s1579 = sand.u32 %s180, 1
        %s1580 = smul.addr %s1579, 512
        %s1581 = scalar_lea.vmem [#allocation10], %s1580
        // Predicated region
        $region61: #{tpu_custom_call.1} parent=43 // pred_check
          %p1582 = pneg %p190
        $region62: #{tpu_custom_call.1} parent=43 // pred_check_branch
          %1584 = sbr.rel (%p1582) target = $region64
        $region63: #{tpu_custom_call.1} parent=43 // pred_region
          %s1585 = smul.u32 64, %s30
          %s1587 = ssub.s32 8192, 8192
          %1588 = vsyncadd %s1578, %s1587
          %s1589 = smul.addr %s29, 64
          %s1590 = sadd.s32 %s1585, %s1589
          %s1591 = smul.addr %s1590, 128
          %s1592 = scalar_lea.hbm %s6, %s1591
          %s1593 = sshll.u32 %s1581, 4
          %s1594 = int_to_ptr.vmem [resolvable:$true] %s1593
          %1599 = dma.vmem_to_hbm [thread:$0]  %s1594, 8192, %s1592, %s1578, 128, 128, 8
        $region64: #{tpu_custom_call.1} parent=43 // pred_fallthru
          _
      $region44: #{tpu_custom_call.1} parent=5 // pred_fallthru
        _
      %p1600 = scmp.le.s32.totalorder 2, %s20
      // Predicated region
      $region65: #{tpu_custom_call.1} parent=5 // pred_check
        %p1601 = pneg %p1600
      $region66: #{tpu_custom_call.1} parent=5 // pred_check_branch
        %1603 = sbr.rel (%p1601) target = $region68
      $region67: #{tpu_custom_call.1} parent=5 // pred_region
        %s1604 = ssub.s32 %s20, 2
        // Predicated region
        $region69: #{tpu_custom_call.1} parent=67 // pred_check
          %p1605 = pneg %p196
        $region70: #{tpu_custom_call.1} parent=67 // pred_check_branch
          %1607 = sbr.rel (%p1605) target = $region72
        $region71: #{tpu_custom_call.1} parent=67 // pred_region
          %s1608 = sand.u32 %s181, 1
          %s1609 = scalar_lea.sflag [#allocation4], %s1608
          %s1610 = sand.u32 %s181, 1
          %s1611 = smul.addr %s1610, 512
          %s1612 = scalar_lea.vmem [#allocation10], %s1611
          %1613 = dma.done %s1609, 8192
        $region72: #{tpu_custom_call.1} parent=67 // pred_fallthru
          _
      $region68: #{tpu_custom_call.1} parent=5 // pred_fallthru
        _
    $region6: #{tpu_custom_call.1} parent=1 // loop_footer
      %s24 = sadd.s32 1, %s20
    $region7: #{tpu_custom_call.1} parent=1 // loop_footer_branch
      %19 = sbr.rel target = $region3
    $region8: #{tpu_custom_call.1} parent=1 // loop_exit
      _
    %1614 = vsyncpa [#allocation3], 1
    %s1615 = scalar_lea.sflag [#allocation3], 1
    %1616 = vsyncpa %s1615, 1
    %1617 = vsyncpa [#allocation8], 1
    %1618 = vsyncpa [#allocation4], 1
    %s1619 = scalar_lea.sflag [#allocation4], 1
    %1620 = vsyncpa %s1619, 1
    %1621 = vsyncpa [#allocation5], 1
    %s1622 = scalar_lea.sflag [#allocation5], 1
    %1623 = vsyncpa %s1622, 1

</llo_original>
